<compile_context>
chip_gen: v7x
topology: tpu7x:2x2x1
jax: 0.10.0
libtpu: 0.0.40
codegen_flags: <defaults>
</compile_context>

<pallas_src>
import jax
import jax.numpy as jnp
from jax.experimental import pallas as pl
from jax.experimental.pallas import tpu as pltpu


NC = 3          # input channels
NDF = 8         # base width (small test config; torch default is 64)
LRELU_SLOPE = 0.2
BN_EPS = 1e-5


# ---------------------------------------------------------------------------
# Pallas kernels
# ---------------------------------------------------------------------------

def conv_lrelu_kernel(p_ref, w_ref, o_ref):
    """Layer 1: conv (as W @ patches) + LeakyReLU(0.2). No BatchNorm, no bias.

    p_ref: (Ckk, B*P)   bf16 im2col patches (contraction dim on sublanes)
    w_ref: (Cout, Ckk)  bf16 flattened conv weight
    o_ref: (Cout, B*P)  bf16 lane-dense output
    """
    y = jnp.dot(w_ref[...], p_ref[...], preferred_element_type=jnp.float32)
    y = jnp.where(y >= 0.0, y, LRELU_SLOPE * y)
    o_ref[...] = y.astype(o_ref.dtype)


def conv_bn_lrelu_kernel(p_ref, w_ref, g_ref, b_ref, o_ref):
    """conv + BatchNorm2d (training-mode batch stats, biased var) + LeakyReLU.

    p_ref: (Ckk, B*P) bf16, w_ref: (Cout, Ckk) bf16,
    g_ref/b_ref: (Cout, 1) f32, o_ref: (Cout, B*P) bf16.
    """
    y = jnp.dot(w_ref[...], p_ref[...], preferred_element_type=jnp.float32)
    mean = jnp.mean(y, axis=1, keepdims=True)                 # per-channel, over (B, H, W)
    d = y - mean
    var = jnp.mean(d * d, axis=1, keepdims=True)              # biased variance
    yh = d * jax.lax.rsqrt(var + BN_EPS) * g_ref[...] + b_ref[...]
    yh = jnp.where(yh >= 0.0, yh, LRELU_SLOPE * yh)
    o_ref[...] = yh.astype(o_ref.dtype)


def conv_bn_lrelu_head_kernel(p_ref, w4_ref, g_ref, b_ref, w5_ref, s_ref, o_ref):
    """Fused tail: conv4 + BN4 + LeakyReLU + conv5 (4x4 full-field) + sigmoid.

    p_ref : (Ckk4, B*16)  bf16 patches of layer 4
    w4_ref: (C4, Ckk4)    bf16
    g_ref/b_ref: (C4, 1)  f32 BN affine
    w5_ref: (C4, B*16)    f32  conv5 weight (C4, 4*4) tiled across batch columns
    s_ref : (B*16, B)     f32  block column-sum selector (1 where col-block == b)
    o_ref : (1, B)        f32  sigmoid probabilities
    """
    y = jnp.dot(w4_ref[...], p_ref[...], preferred_element_type=jnp.float32)
    mean = jnp.mean(y, axis=1, keepdims=True)
    d = y - mean
    var = jnp.mean(d * d, axis=1, keepdims=True)
    yh = d * jax.lax.rsqrt(var + BN_EPS) * g_ref[...] + b_ref[...]
    a4 = jnp.where(yh >= 0.0, yh, LRELU_SLOPE * yh)           # (C4, B*16)

    # conv5: out[b] = sum_{c, s} a4[c, b*16+s] * W5[c, s]
    prod = a4 * w5_ref[...]                                   # (C4, B*16)
    colsum = jnp.sum(prod, axis=0, keepdims=True)             # (1, B*16)
    logits = jnp.dot(colsum, s_ref[...],
                     preferred_element_type=jnp.float32)      # (1, B)
    o_ref[...] = 1.0 / (1.0 + jnp.exp(-logits))               # sigmoid


# ---------------------------------------------------------------------------
# Wrappers (im2col is cheap XLA glue on < 0.5 MB arrays)
# ---------------------------------------------------------------------------

def _im2col_cbhw(a, k, s, p, pad_ckk_to=None):
    """a: (C, B, H, W) -> patches (Ckk[, padded], B*OH*OW) bf16.

    Contraction ordering is (c, kh, kw), matching torch weight.reshape(Cout, -1).
    Column ordering is b*(OH*OW) + oh*OW + ow.  Channel-major input layout means
    no transpose is needed to make the contraction axis leading.
    """
    C, B, H, W = a.shape
    OH = (H + 2 * p - k) // s + 1
    OW = (W + 2 * p - k) // s + 1
    ap = jnp.pad(a, ((0, 0), (0, 0), (p, p), (p, p)))
    cols = []
    for kh in range(k):
        for kw in range(k):
            cols.append(ap[:, :,
                           kh:kh + s * (OH - 1) + 1:s,
                           kw:kw + s * (OW - 1) + 1:s])        # (C, B, OH, OW)
    pat = jnp.stack(cols, axis=1)                              # (C, k*k, B, OH, OW)
    pat = pat.reshape(C * k * k, B * OH * OW)                  # (c, kh, kw) major
    ckk = C * k * k
    if pad_ckk_to is not None and pad_ckk_to > ckk:
        pat = jnp.pad(pat, ((0, pad_ckk_to - ckk), (0, 0)))
    return pat.astype(jnp.bfloat16), OH, OW


def _full_spec(shape):
    n = len(shape)
    return pl.BlockSpec(shape, lambda i, _n=n: (0,) * _n)


def _call(kernel, operands, out_shape, out_dtype):
    return pl.pallas_call(
        kernel,
        out_shape=jax.ShapeDtypeStruct(out_shape, out_dtype),
        grid=(1,),
        in_specs=[_full_spec(op.shape) for op in operands],
        out_specs=_full_spec(out_shape),
        compiler_params=pltpu.CompilerParams(
            dimension_semantics=("arbitrary",)),
    )(*operands)


def conv_lrelu(a_cb, w2d):
    """Layer 1.  a_cb: (C, B, H, W) -> (Cout, B, OH, OW) bf16."""
    B = a_cb.shape[1]
    pat, OH, OW = _im2col_cbhw(a_cb, 4, 2, 1, pad_ckk_to=w2d.shape[1])
    Cout = w2d.shape[0]
    out = _call(conv_lrelu_kernel, (pat, w2d), (Cout, pat.shape[1]),
                jnp.bfloat16)
    return out.reshape(Cout, B, OH, OW)


def conv_bn_lrelu(a_cb, w2d, gamma, beta):
    """Layers 2-3.  a_cb: (C, B, H, W) -> (Cout, B, OH, OW) bf16."""
    B = a_cb.shape[1]
    pat, OH, OW = _im2col_cbhw(a_cb, 4, 2, 1, pad_ckk_to=w2d.shape[1])
    Cout = w2d.shape[0]
    out = _call(conv_bn_lrelu_kernel, (pat, w2d, gamma, beta),
                (Cout, pat.shape[1]), jnp.bfloat16)
    return out.reshape(Cout, B, OH, OW)


def conv_bn_lrelu_head(a_cb, w4_2d, gamma, beta, w5r):
    """Fused tail.  a_cb: (C3, B, 8, 8) -> (B,) sigmoid scores."""
    B = a_cb.shape[1]
    pat, OH, OW = _im2col_cbhw(a_cb, 4, 2, 1, pad_ckk_to=w4_2d.shape[1])
    P = OH * OW                                                # = 16
    BP = pat.shape[1]
    w5_full = jnp.tile(w5r, (1, B)).astype(jnp.float32)        # (C4, B*16)
    s_mat = (jnp.arange(BP)[:, None] // P
             == jnp.arange(B)[None, :]).astype(jnp.float32)    # (B*16, B)
    out = _call(conv_bn_lrelu_head_kernel,
                (pat, w4_2d, gamma, beta, w5_full, s_mat), (1, B),
                jnp.float32)
    return out.reshape(B)


@jax.jit
def discriminator_forward(x, params):
    """x: (B, nc, 64, 64) f32 -> (B,) sigmoid scores (matches .view(-1,1).squeeze(1))."""
    w1, w2, g2, b2, w3, g3, b3, w4, g4, b4, w5r = params
    x_cb = jnp.transpose(x, (1, 0, 2, 3))      # single small transpose of the input
    a1 = conv_lrelu(x_cb, w1)                  # (  ndf, B, 32, 32) bf16
    a2 = conv_bn_lrelu(a1, w2, g2, b2)         # (2*ndf, B, 16, 16) bf16
    a3 = conv_bn_lrelu(a2, w3, g3, b3)         # (4*ndf, B,  8,  8) bf16
    y = conv_bn_lrelu_head(a3, w4, g4, b4, w5r)   # (B,)
    return y


# ---------------------------------------------------------------------------
# Parameter construction (shapes match the torch module; bias=False everywhere)
# ---------------------------------------------------------------------------

def init_params(key, nc=NC, ndf=NDF):
    def conv_w(k_, cout, cin, ksz):
        fan_in = cin * ksz * ksz
        return jax.random.normal(k_, (cout, cin, ksz, ksz), jnp.float32) / jnp.sqrt(fan_in)

    keys = jax.random.split(key, 8)
    w1 = conv_w(keys[0], ndf, nc, 4)
    w2 = conv_w(keys[1], ndf * 2, ndf, 4)
    w3 = conv_w(keys[2], ndf * 4, ndf * 2, 4)
    w4 = conv_w(keys[3], ndf * 8, ndf * 4, 4)
    w5 = conv_w(keys[4], 1, ndf * 8, 4)

    def flat(w, pad_to=None):
        cout = w.shape[0]
        w2d = w.reshape(cout, -1)                  # contraction order (c, kh, kw)
        if pad_to is not None and pad_to > w2d.shape[1]:
            w2d = jnp.pad(w2d, ((0, 0), (0, pad_to - w2d.shape[1])))
        return w2d.astype(jnp.bfloat16)

    def bn(k_, c):
        kg, kb = jax.random.split(k_)
        gamma = 1.0 + 0.1 * jax.random.normal(kg, (c, 1), jnp.float32)
        beta = 0.1 * jax.random.normal(kb, (c, 1), jnp.float32)
        return gamma, beta

    g2, b2 = bn(keys[5], ndf * 2)
    g3, b3 = bn(keys[6], ndf * 4)
    g4, b4 = bn(keys[7], ndf * 8)

    ckk1_pad = ((nc * 16 + 127) // 128) * 128      # 48 -> 128
    w5r = w5[0].reshape(ndf * 8, 16).astype(jnp.float32)   # (C4, 4*4)

    return (flat(w1, ckk1_pad),
            flat(w2), g2, b2,
            flat(w3), g3, b3,
            flat(w4), g4, b4,
            w5r)


if __name__ == "__main__":
    # Spatial size must be 64 so the final Conv(4,1,0) collapses 4x4 -> 1x1.
    B, H = 2, 64
    key = jax.random.PRNGKey(0)
    kx, kp = jax.random.split(key)
    x = jax.random.normal(kx, (B, NC, H, H), jnp.float32)
    params = init_params(kp, nc=NC, ndf=NDF)

    y = discriminator_forward(x, params)
    jax.block_until_ready(y)

    assert y.shape == (B,), y.shape
    assert bool(jnp.all(jnp.isfinite(y)))
    assert bool(jnp.all((y >= 0.0) & (y <= 1.0)))
    print("KERNEL_OK")
</pallas_src>

<mosaic_0001>
module attributes {stable_mosaic.version = 11 : i64} {
  func.func @conv_lrelu_kernel(%arg0: i32, %arg1: memref<128x2048xbf16, #tpu.memory_space<vmem>>, %arg2: memref<8x128xbf16, #tpu.memory_space<vmem>>, %arg3: memref<8x2048xbf16, #tpu.memory_space<vmem>>) attributes {dimension_semantics = [#tpu.dimension_semantics<arbitrary>], iteration_bounds = array<i64: 1>, scalar_prefetch = 0 : i64, scratch_operands = 0 : i64, tpu.core_type = #tpu.core_type<tc>, window_params = [{pipeline_mode = #tpu.pipeline_mode<synchronous>, transform_indices = @transform_0, window_bounds = array<i64: 128, 2048>}, {pipeline_mode = #tpu.pipeline_mode<synchronous>, transform_indices = @transform_1, window_bounds = array<i64: 8, 128>}, {pipeline_mode = #tpu.pipeline_mode<synchronous>, transform_indices = @transform_2, window_bounds = array<i64: 8, 2048>}]} {
    %c0 = arith.constant 0 : index
    %c0_0 = arith.constant 0 : index
    %0 = vector.load %arg2[%c0, %c0_0] : memref<8x128xbf16, #tpu.memory_space<vmem>>, vector<8x128xbf16>
    %c0_1 = arith.constant 0 : index
    %c0_2 = arith.constant 0 : index
    %1 = vector.load %arg1[%c0_1, %c0_2] : memref<128x2048xbf16, #tpu.memory_space<vmem>>, vector<128x2048xbf16>
    %cst = arith.constant dense<0.000000e+00> : vector<8x2048xf32>
    %2 = tpu.matmul %0, %1, %cst {dimension_numbers = #tpu.dot_dimension_numbers<[1], [0], [0], [1], [0, 0, 1, 1], [], []>} : vector<8x128xbf16>, vector<128x2048xbf16>, vector<8x2048xf32> -> vector<8x2048xf32>
    %cst_3 = arith.constant 0.000000e+00 : f32
    %3 = vector.broadcast %cst_3 : f32 to vector<8x2048xf32>
    %4 = arith.cmpf oge, %2, %3 : vector<8x2048xf32>
    %cst_4 = arith.constant 2.000000e-01 : f32
    %5 = vector.broadcast %cst_4 : f32 to vector<8x2048xf32>
    %6 = arith.mulf %5, %2 : vector<8x2048xf32>
    %7 = arith.select %4, %2, %6 : vector<8x2048xi1>, vector<8x2048xf32>
    %8 = arith.truncf %7 : vector<8x2048xf32> to vector<8x2048xbf16>
    %c0_5 = arith.constant 0 : index
    %c0_6 = arith.constant 0 : index
    %9 = vector.load %arg3[%c0_5, %c0_6] : memref<8x2048xbf16, #tpu.memory_space<vmem>>, vector<8x2048xbf16>
    tpu.vector_store %arg3[%c0_5, %c0_6], %8 {strides = array<i32>} : memref<8x2048xbf16, #tpu.memory_space<vmem>>, vector<8x2048xbf16>,
    return
  }
  func.func @transform_0(%arg0: i32) -> (i32, i32) {
    %c0_i32 = arith.constant 0 : i32
    %c0_i32_0 = arith.constant 0 : i32
    %c0_i32_1 = arith.constant 0 : i32
    return %c0_i32, %c0_i32_0 : i32, i32
  }
  func.func @transform_1(%arg0: i32) -> (i32, i32) {
    %c0_i32 = arith.constant 0 : i32
    %c0_i32_0 = arith.constant 0 : i32
    %c0_i32_1 = arith.constant 0 : i32
    return %c0_i32, %c0_i32_0 : i32, i32
  }
  func.func @transform_2(%arg0: i32) -> (i32, i32) {
    %c0_i32 = arith.constant 0 : i32
    %c0_i32_0 = arith.constant 0 : i32
    %c0_i32_1 = arith.constant 0 : i32
    return %c0_i32, %c0_i32_0 : i32, i32
  }
}

module attributes {stable_mosaic.version = 11 : i64} {
  func.func @conv_bn_lrelu_kernel(%arg0: i32, %arg1: memref<128x512xbf16, #tpu.memory_space<vmem>>, %arg2: memref<16x128xbf16, #tpu.memory_space<vmem>>, %arg3: memref<16x1xf32, #tpu.memory_space<vmem>>, %arg4: memref<16x1xf32, #tpu.memory_space<vmem>>, %arg5: memref<16x512xbf16, #tpu.memory_space<vmem>>) attributes {dimension_semantics = [#tpu.dimension_semantics<arbitrary>], iteration_bounds = array<i64: 1>, scalar_prefetch = 0 : i64, scratch_operands = 0 : i64, tpu.core_type = #tpu.core_type<tc>, window_params = [{pipeline_mode = #tpu.pipeline_mode<synchronous>, transform_indices = @transform_0, window_bounds = array<i64: 128, 512>}, {pipeline_mode = #tpu.pipeline_mode<synchronous>, transform_indices = @transform_1, window_bounds = array<i64: 16, 128>}, {pipeline_mode = #tpu.pipeline_mode<synchronous>, transform_indices = @transform_2, window_bounds = array<i64: 16, 1>}, {pipeline_mode = #tpu.pipeline_mode<synchronous>, transform_indices = @transform_3, window_bounds = array<i64: 16, 1>}, {pipeline_mode = #tpu.pipeline_mode<synchronous>, transform_indices = @transform_4, window_bounds = array<i64: 16, 512>}]} {
    %c0 = arith.constant 0 : index
    %c0_0 = arith.constant 0 : index
    %0 = vector.load %arg2[%c0, %c0_0] : memref<16x128xbf16, #tpu.memory_space<vmem>>, vector<16x128xbf16>
    %c0_1 = arith.constant 0 : index
    %c0_2 = arith.constant 0 : index
    %1 = vector.load %arg1[%c0_1, %c0_2] : memref<128x512xbf16, #tpu.memory_space<vmem>>, vector<128x512xbf16>
    %cst = arith.constant dense<0.000000e+00> : vector<16x512xf32>
    %2 = tpu.matmul %0, %1, %cst {dimension_numbers = #tpu.dot_dimension_numbers<[1], [0], [0], [1], [0, 0, 1, 1], [], []>} : vector<16x128xbf16>, vector<128x512xbf16>, vector<16x512xf32> -> vector<16x512xf32>
    %cst_3 = arith.constant dense<0.000000e+00> : vector<16xf32>
    %3 = vector.multi_reduction <add>, %2, %cst_3 [1] : vector<16x512xf32> to vector<16xf32>
    %4 = vector.shape_cast %3 : vector<16xf32> to vector<16x1xf32>
    %cst_4 = arith.constant 5.120000e+02 : f32
    %5 = vector.broadcast %cst_4 : f32 to vector<16x1xf32>
    %6 = arith.divf %4, %5 : vector<16x1xf32>
    %7 = vector.broadcast %6 : vector<16x1xf32> to vector<16x512xf32>
    %8 = arith.subf %2, %7 : vector<16x512xf32>
    %9 = arith.mulf %8, %8 : vector<16x512xf32>
    %cst_5 = arith.constant dense<0.000000e+00> : vector<16xf32>
    %10 = vector.multi_reduction <add>, %9, %cst_5 [1] : vector<16x512xf32> to vector<16xf32>
    %11 = vector.shape_cast %10 : vector<16xf32> to vector<16x1xf32>
    %cst_6 = arith.constant 5.120000e+02 : f32
    %12 = vector.broadcast %cst_6 : f32 to vector<16x1xf32>
    %13 = arith.divf %11, %12 : vector<16x1xf32>
    %cst_7 = arith.constant 9.99999974E-6 : f32
    %14 = vector.broadcast %cst_7 : f32 to vector<16x1xf32>
    %15 = arith.addf %13, %14 : vector<16x1xf32>
    %16 = math.rsqrt %15 : vector<16x1xf32>
    %17 = vector.broadcast %16 : vector<16x1xf32> to vector<16x512xf32>
    %18 = arith.mulf %8, %17 : vector<16x512xf32>
    %c0_8 = arith.constant 0 : index
    %c0_9 = arith.constant 0 : index
    %19 = vector.load %arg3[%c0_8, %c0_9] : memref<16x1xf32, #tpu.memory_space<vmem>>, vector<16x1xf32>
    %20 = vector.broadcast %19 : vector<16x1xf32> to vector<16x512xf32>
    %21 = arith.mulf %18, %20 : vector<16x512xf32>
    %c0_10 = arith.constant 0 : index
    %c0_11 = arith.constant 0 : index
    %22 = vector.load %arg4[%c0_10, %c0_11] : memref<16x1xf32, #tpu.memory_space<vmem>>, vector<16x1xf32>
    %23 = vector.broadcast %22 : vector<16x1xf32> to vector<16x512xf32>
    %24 = arith.addf %21, %23 : vector<16x512xf32>
    %cst_12 = arith.constant 0.000000e+00 : f32
    %25 = vector.broadcast %cst_12 : f32 to vector<16x512xf32>
    %26 = arith.cmpf oge, %24, %25 : vector<16x512xf32>
    %cst_13 = arith.constant 2.000000e-01 : f32
    %27 = vector.broadcast %cst_13 : f32 to vector<16x512xf32>
    %28 = arith.mulf %27, %24 : vector<16x512xf32>
    %29 = arith.select %26, %24, %28 : vector<16x512xi1>, vector<16x512xf32>
    %30 = arith.truncf %29 : vector<16x512xf32> to vector<16x512xbf16>
    %c0_14 = arith.constant 0 : index
    %c0_15 = arith.constant 0 : index
    %31 = vector.load %arg5[%c0_14, %c0_15] : memref<16x512xbf16, #tpu.memory_space<vmem>>, vector<16x512xbf16>
    tpu.vector_store %arg5[%c0_14, %c0_15], %30 {strides = array<i32>} : memref<16x512xbf16, #tpu.memory_space<vmem>>, vector<16x512xbf16>,
    return
  }
  func.func @transform_0(%arg0: i32) -> (i32, i32) {
    %c0_i32 = arith.constant 0 : i32
    %c0_i32_0 = arith.constant 0 : i32
    %c0_i32_1 = arith.constant 0 : i32
    return %c0_i32, %c0_i32_0 : i32, i32
  }
  func.func @transform_1(%arg0: i32) -> (i32, i32) {
    %c0_i32 = arith.constant 0 : i32
    %c0_i32_0 = arith.constant 0 : i32
    %c0_i32_1 = arith.constant 0 : i32
    return %c0_i32, %c0_i32_0 : i32, i32
  }
  func.func @transform_2(%arg0: i32) -> (i32, i32) {
    %c0_i32 = arith.constant 0 : i32
    %c0_i32_0 = arith.constant 0 : i32
    %c0_i32_1 = arith.constant 0 : i32
    return %c0_i32, %c0_i32_0 : i32, i32
  }
  func.func @transform_3(%arg0: i32) -> (i32, i32) {
    %c0_i32 = arith.constant 0 : i32
    %c0_i32_0 = arith.constant 0 : i32
    %c0_i32_1 = arith.constant 0 : i32
    return %c0_i32, %c0_i32_0 : i32, i32
  }
  func.func @transform_4(%arg0: i32) -> (i32, i32) {
    %c0_i32 = arith.constant 0 : i32
    %c0_i32_0 = arith.constant 0 : i32
    %c0_i32_1 = arith.constant 0 : i32
    return %c0_i32, %c0_i32_0 : i32, i32
  }
}

module attributes {stable_mosaic.version = 11 : i64} {
  func.func @conv_bn_lrelu_kernel(%arg0: i32, %arg1: memref<256x128xbf16, #tpu.memory_space<vmem>>, %arg2: memref<32x256xbf16, #tpu.memory_space<vmem>>, %arg3: memref<32x1xf32, #tpu.memory_space<vmem>>, %arg4: memref<32x1xf32, #tpu.memory_space<vmem>>, %arg5: memref<32x128xbf16, #tpu.memory_space<vmem>>) attributes {dimension_semantics = [#tpu.dimension_semantics<arbitrary>], iteration_bounds = array<i64: 1>, scalar_prefetch = 0 : i64, scratch_operands = 0 : i64, tpu.core_type = #tpu.core_type<tc>, window_params = [{pipeline_mode = #tpu.pipeline_mode<synchronous>, transform_indices = @transform_0, window_bounds = array<i64: 256, 128>}, {pipeline_mode = #tpu.pipeline_mode<synchronous>, transform_indices = @transform_1, window_bounds = array<i64: 32, 256>}, {pipeline_mode = #tpu.pipeline_mode<synchronous>, transform_indices = @transform_2, window_bounds = array<i64: 32, 1>}, {pipeline_mode = #tpu.pipeline_mode<synchronous>, transform_indices = @transform_3, window_bounds = array<i64: 32, 1>}, {pipeline_mode = #tpu.pipeline_mode<synchronous>, transform_indices = @transform_4, window_bounds = array<i64: 32, 128>}]} {
    %c0 = arith.constant 0 : index
    %c0_0 = arith.constant 0 : index
    %0 = vector.load %arg2[%c0, %c0_0] : memref<32x256xbf16, #tpu.memory_space<vmem>>, vector<32x256xbf16>
    %c0_1 = arith.constant 0 : index
    %c0_2 = arith.constant 0 : index
    %1 = vector.load %arg1[%c0_1, %c0_2] : memref<256x128xbf16, #tpu.memory_space<vmem>>, vector<256x128xbf16>
    %cst = arith.constant dense<0.000000e+00> : vector<32x128xf32>
    %2 = tpu.matmul %0, %1, %cst {dimension_numbers = #tpu.dot_dimension_numbers<[1], [0], [0], [1], [0, 0, 1, 1], [], []>} : vector<32x256xbf16>, vector<256x128xbf16>, vector<32x128xf32> -> vector<32x128xf32>
    %cst_3 = arith.constant dense<0.000000e+00> : vector<32xf32>
    %3 = vector.multi_reduction <add>, %2, %cst_3 [1] : vector<32x128xf32> to vector<32xf32>
    %4 = vector.shape_cast %3 : vector<32xf32> to vector<32x1xf32>
    %cst_4 = arith.constant 1.280000e+02 : f32
    %5 = vector.broadcast %cst_4 : f32 to vector<32x1xf32>
    %6 = arith.divf %4, %5 : vector<32x1xf32>
    %7 = vector.broadcast %6 : vector<32x1xf32> to vector<32x128xf32>
    %8 = arith.subf %2, %7 : vector<32x128xf32>
    %9 = arith.mulf %8, %8 : vector<32x128xf32>
    %cst_5 = arith.constant dense<0.000000e+00> : vector<32xf32>
    %10 = vector.multi_reduction <add>, %9, %cst_5 [1] : vector<32x128xf32> to vector<32xf32>
    %11 = vector.shape_cast %10 : vector<32xf32> to vector<32x1xf32>
    %cst_6 = arith.constant 1.280000e+02 : f32
    %12 = vector.broadcast %cst_6 : f32 to vector<32x1xf32>
    %13 = arith.divf %11, %12 : vector<32x1xf32>
    %cst_7 = arith.constant 9.99999974E-6 : f32
    %14 = vector.broadcast %cst_7 : f32 to vector<32x1xf32>
    %15 = arith.addf %13, %14 : vector<32x1xf32>
    %16 = math.rsqrt %15 : vector<32x1xf32>
    %17 = vector.broadcast %16 : vector<32x1xf32> to vector<32x128xf32>
    %18 = arith.mulf %8, %17 : vector<32x128xf32>
    %c0_8 = arith.constant 0 : index
    %c0_9 = arith.constant 0 : index
    %19 = vector.load %arg3[%c0_8, %c0_9] : memref<32x1xf32, #tpu.memory_space<vmem>>, vector<32x1xf32>
    %20 = vector.broadcast %19 : vector<32x1xf32> to vector<32x128xf32>
    %21 = arith.mulf %18, %20 : vector<32x128xf32>
    %c0_10 = arith.constant 0 : index
    %c0_11 = arith.constant 0 : index
    %22 = vector.load %arg4[%c0_10, %c0_11] : memref<32x1xf32, #tpu.memory_space<vmem>>, vector<32x1xf32>
    %23 = vector.broadcast %22 : vector<32x1xf32> to vector<32x128xf32>
    %24 = arith.addf %21, %23 : vector<32x128xf32>
    %cst_12 = arith.constant 0.000000e+00 : f32
    %25 = vector.broadcast %cst_12 : f32 to vector<32x128xf32>
    %26 = arith.cmpf oge, %24, %25 : vector<32x128xf32>
    %cst_13 = arith.constant 2.000000e-01 : f32
    %27 = vector.broadcast %cst_13 : f32 to vector<32x128xf32>
    %28 = arith.mulf %27, %24 : vector<32x128xf32>
    %29 = arith.select %26, %24, %28 : vector<32x128xi1>, vector<32x128xf32>
    %30 = arith.truncf %29 : vector<32x128xf32> to vector<32x128xbf16>
    %c0_14 = arith.constant 0 : index
    %c0_15 = arith.constant 0 : index
    %31 = vector.load %arg5[%c0_14, %c0_15] : memref<32x128xbf16, #tpu.memory_space<vmem>>, vector<32x128xbf16>
    tpu.vector_store %arg5[%c0_14, %c0_15], %30 {strides = array<i32>} : memref<32x128xbf16, #tpu.memory_space<vmem>>, vector<32x128xbf16>,
    return
  }
  func.func @transform_0(%arg0: i32) -> (i32, i32) {
    %c0_i32 = arith.constant 0 : i32
    %c0_i32_0 = arith.constant 0 : i32
    %c0_i32_1 = arith.constant 0 : i32
    return %c0_i32, %c0_i32_0 : i32, i32
  }
  func.func @transform_1(%arg0: i32) -> (i32, i32) {
    %c0_i32 = arith.constant 0 : i32
    %c0_i32_0 = arith.constant 0 : i32
    %c0_i32_1 = arith.constant 0 : i32
    return %c0_i32, %c0_i32_0 : i32, i32
  }
  func.func @transform_2(%arg0: i32) -> (i32, i32) {
    %c0_i32 = arith.constant 0 : i32
    %c0_i32_0 = arith.constant 0 : i32
    %c0_i32_1 = arith.constant 0 : i32
    return %c0_i32, %c0_i32_0 : i32, i32
  }
  func.func @transform_3(%arg0: i32) -> (i32, i32) {
    %c0_i32 = arith.constant 0 : i32
    %c0_i32_0 = arith.constant 0 : i32
    %c0_i32_1 = arith.constant 0 : i32
    return %c0_i32, %c0_i32_0 : i32, i32
  }
  func.func @transform_4(%arg0: i32) -> (i32, i32) {
    %c0_i32 = arith.constant 0 : i32
    %c0_i32_0 = arith.constant 0 : i32
    %c0_i32_1 = arith.constant 0 : i32
    return %c0_i32, %c0_i32_0 : i32, i32
  }
}

module attributes {stable_mosaic.version = 11 : i64} {
  func.func @conv_bn_lrelu_head_kernel(%arg0: i32, %arg1: memref<512x32xbf16, #tpu.memory_space<vmem>>, %arg2: memref<64x512xbf16, #tpu.memory_space<vmem>>, %arg3: memref<64x1xf32, #tpu.memory_space<vmem>>, %arg4: memref<64x1xf32, #tpu.memory_space<vmem>>, %arg5: memref<64x32xf32, #tpu.memory_space<vmem>>, %arg6: memref<32x2xf32, #tpu.memory_space<vmem>>, %arg7: memref<1x2xf32, #tpu.memory_space<vmem>>) attributes {dimension_semantics = [#tpu.dimension_semantics<arbitrary>], iteration_bounds = array<i64: 1>, scalar_prefetch = 0 : i64, scratch_operands = 0 : i64, tpu.core_type = #tpu.core_type<tc>, window_params = [{pipeline_mode = #tpu.pipeline_mode<synchronous>, transform_indices = @transform_0, window_bounds = array<i64: 512, 32>}, {pipeline_mode = #tpu.pipeline_mode<synchronous>, transform_indices = @transform_1, window_bounds = array<i64: 64, 512>}, {pipeline_mode = #tpu.pipeline_mode<synchronous>, transform_indices = @transform_2, window_bounds = array<i64: 64, 1>}, {pipeline_mode = #tpu.pipeline_mode<synchronous>, transform_indices = @transform_3, window_bounds = array<i64: 64, 1>}, {pipeline_mode = #tpu.pipeline_mode<synchronous>, transform_indices = @transform_4, window_bounds = array<i64: 64, 32>}, {pipeline_mode = #tpu.pipeline_mode<synchronous>, transform_indices = @transform_5, window_bounds = array<i64: 32, 2>}, {pipeline_mode = #tpu.pipeline_mode<synchronous>, transform_indices = @transform_6, window_bounds = array<i64: 1, 2>}]} {
    %c0 = arith.constant 0 : index
    %c0_0 = arith.constant 0 : index
    %0 = vector.load %arg2[%c0, %c0_0] : memref<64x512xbf16, #tpu.memory_space<vmem>>, vector<64x512xbf16>
    %c0_1 = arith.constant 0 : index
    %c0_2 = arith.constant 0 : index
    %1 = vector.load %arg1[%c0_1, %c0_2] : memref<512x32xbf16, #tpu.memory_space<vmem>>, vector<512x32xbf16>
    %cst = arith.constant dense<0.000000e+00> : vector<64x32xf32>
    %2 = tpu.matmul %0, %1, %cst {dimension_numbers = #tpu.dot_dimension_numbers<[1], [0], [0], [1], [0, 0, 1, 1], [], []>} : vector<64x512xbf16>, vector<512x32xbf16>, vector<64x32xf32> -> vector<64x32xf32>
    %cst_3 = arith.constant dense<0.000000e+00> : vector<64xf32>
    %3 = vector.multi_reduction <add>, %2, %cst_3 [1] : vector<64x32xf32> to vector<64xf32>
    %4 = vector.shape_cast %3 : vector<64xf32> to vector<64x1xf32>
    %cst_4 = arith.constant 3.200000e+01 : f32
    %5 = vector.broadcast %cst_4 : f32 to vector<64x1xf32>
    %6 = arith.divf %4, %5 : vector<64x1xf32>
    %7 = vector.broadcast %6 : vector<64x1xf32> to vector<64x32xf32>
    %8 = arith.subf %2, %7 : vector<64x32xf32>
    %9 = arith.mulf %8, %8 : vector<64x32xf32>
    %cst_5 = arith.constant dense<0.000000e+00> : vector<64xf32>
    %10 = vector.multi_reduction <add>, %9, %cst_5 [1] : vector<64x32xf32> to vector<64xf32>
    %11 = vector.shape_cast %10 : vector<64xf32> to vector<64x1xf32>
    %cst_6 = arith.constant 3.200000e+01 : f32
    %12 = vector.broadcast %cst_6 : f32 to vector<64x1xf32>
    %13 = arith.divf %11, %12 : vector<64x1xf32>
    %cst_7 = arith.constant 9.99999974E-6 : f32
    %14 = vector.broadcast %cst_7 : f32 to vector<64x1xf32>
    %15 = arith.addf %13, %14 : vector<64x1xf32>
    %16 = math.rsqrt %15 : vector<64x1xf32>
    %17 = vector.broadcast %16 : vector<64x1xf32> to vector<64x32xf32>
    %18 = arith.mulf %8, %17 : vector<64x32xf32>
    %c0_8 = arith.constant 0 : index
    %c0_9 = arith.constant 0 : index
    %19 = vector.load %arg3[%c0_8, %c0_9] : memref<64x1xf32, #tpu.memory_space<vmem>>, vector<64x1xf32>
    %20 = vector.broadcast %19 : vector<64x1xf32> to vector<64x32xf32>
    %21 = arith.mulf %18, %20 : vector<64x32xf32>
    %c0_10 = arith.constant 0 : index
    %c0_11 = arith.constant 0 : index
    %22 = vector.load %arg4[%c0_10, %c0_11] : memref<64x1xf32, #tpu.memory_space<vmem>>, vector<64x1xf32>
    %23 = vector.broadcast %22 : vector<64x1xf32> to vector<64x32xf32>
    %24 = arith.addf %21, %23 : vector<64x32xf32>
    %cst_12 = arith.constant 0.000000e+00 : f32
    %25 = vector.broadcast %cst_12 : f32 to vector<64x32xf32>
    %26 = arith.cmpf oge, %24, %25 : vector<64x32xf32>
    %cst_13 = arith.constant 2.000000e-01 : f32
    %27 = vector.broadcast %cst_13 : f32 to vector<64x32xf32>
    %28 = arith.mulf %27, %24 : vector<64x32xf32>
    %29 = arith.select %26, %24, %28 : vector<64x32xi1>, vector<64x32xf32>
    %c0_14 = arith.constant 0 : index
    %c0_15 = arith.constant 0 : index
    %30 = vector.load %arg5[%c0_14, %c0_15] : memref<64x32xf32, #tpu.memory_space<vmem>>, vector<64x32xf32>
    %31 = arith.mulf %29, %30 : vector<64x32xf32>
    %cst_16 = arith.constant dense<0.000000e+00> : vector<32xf32>
    %32 = vector.multi_reduction <add>, %31, %cst_16 [0] : vector<64x32xf32> to vector<32xf32>
    %33 = vector.shape_cast %32 : vector<32xf32> to vector<1x32xf32>
    %c0_17 = arith.constant 0 : index
    %c0_18 = arith.constant 0 : index
    %34 = vector.load %arg6[%c0_17, %c0_18] : memref<32x2xf32, #tpu.memory_space<vmem>>, vector<32x2xf32>
    %cst_19 = arith.constant dense<0.000000e+00> : vector<1x2xf32>
    %35 = tpu.matmul %33, %34, %cst_19 {dimension_numbers = #tpu.dot_dimension_numbers<[1], [0], [0], [1], [0, 0, 1, 1], [], []>} : vector<1x32xf32>, vector<32x2xf32>, vector<1x2xf32> -> vector<1x2xf32>
    %cst_20 = arith.constant 0.000000e+00 : f32
    %36 = vector.broadcast %cst_20 : f32 to vector<1x2xf32>
    %37 = arith.subf %36, %35 : vector<1x2xf32>
    %38 = math.exp %37 : vector<1x2xf32>
    %cst_21 = arith.constant 1.000000e+00 : f32
    %39 = vector.broadcast %cst_21 : f32 to vector<1x2xf32>
    %40 = arith.addf %39, %38 : vector<1x2xf32>
    %cst_22 = arith.constant 1.000000e+00 : f32
    %41 = vector.broadcast %cst_22 : f32 to vector<1x2xf32>
    %42 = arith.divf %41, %40 : vector<1x2xf32>
    %c0_23 = arith.constant 0 : index
    %c0_24 = arith.constant 0 : index
    %43 = vector.load %arg7[%c0_23, %c0_24] : memref<1x2xf32, #tpu.memory_space<vmem>>, vector<1x2xf32>
    tpu.vector_store %arg7[%c0_23, %c0_24], %42 {strides = array<i32>} : memref<1x2xf32, #tpu.memory_space<vmem>>, vector<1x2xf32>,
    return
  }
  func.func @transform_0(%arg0: i32) -> (i32, i32) {
    %c0_i32 = arith.constant 0 : i32
    %c0_i32_0 = arith.constant 0 : i32
    %c0_i32_1 = arith.constant 0 : i32
    return %c0_i32, %c0_i32_0 : i32, i32
  }
  func.func @transform_1(%arg0: i32) -> (i32, i32) {
    %c0_i32 = arith.constant 0 : i32
    %c0_i32_0 = arith.constant 0 : i32
    %c0_i32_1 = arith.constant 0 : i32
    return %c0_i32, %c0_i32_0 : i32, i32
  }
  func.func @transform_2(%arg0: i32) -> (i32, i32) {
    %c0_i32 = arith.constant 0 : i32
    %c0_i32_0 = arith.constant 0 : i32
    %c0_i32_1 = arith.constant 0 : i32
    return %c0_i32, %c0_i32_0 : i32, i32
  }
  func.func @transform_3(%arg0: i32) -> (i32, i32) {
    %c0_i32 = arith.constant 0 : i32
    %c0_i32_0 = arith.constant 0 : i32
    %c0_i32_1 = arith.constant 0 : i32
    return %c0_i32, %c0_i32_0 : i32, i32
  }
  func.func @transform_4(%arg0: i32) -> (i32, i32) {
    %c0_i32 = arith.constant 0 : i32
    %c0_i32_0 = arith.constant 0 : i32
    %c0_i32_1 = arith.constant 0 : i32
    return %c0_i32, %c0_i32_0 : i32, i32
  }
  func.func @transform_5(%arg0: i32) -> (i32, i32) {
    %c0_i32 = arith.constant 0 : i32
    %c0_i32_0 = arith.constant 0 : i32
    %c0_i32_1 = arith.constant 0 : i32
    return %c0_i32, %c0_i32_0 : i32, i32
  }
  func.func @transform_6(%arg0: i32) -> (i32, i32) {
    %c0_i32 = arith.constant 0 : i32
    %c0_i32_0 = arith.constant 0 : i32
    %c0_i32_1 = arith.constant 0 : i32
    return %c0_i32, %c0_i32_0 : i32, i32
  }
}

</mosaic_0001>

<llo_original>
// kernel: discriminator_forward.4
$region0: #{discriminator_forward.4}
  #allocation0 [shape = 'u32[]', space=smem, size = 0x4, offset = 0x4, fixed_abs, tag = 'smem constant byte address 0x4 - core index']
  #allocation1 [shape = 'u32[144,128]{1,0:T(1,128)}', space=vmem, size = 0x12000, scoped, tag = 'internal scratch']
  %s0 = inlined_call_operand.vmem [shape: bf16[128,2048], index: 0, kind: input, shape index: {}]
  %s1 = inlined_call_operand.vmem [shape: bf16[8,128], index: 1, kind: input, shape index: {}]
  %s2 = inlined_call_operand.vmem [shape: bf16[8,2048], index: 2, kind: output, shape index: {}]
  %s3 = sld [smem:[#allocation0]]
  $region18: #{discriminator_forward.4} parent=0
    _
  %s5 = ssub.s32 1, %s3
  %s6 = scalar_select 0, %s5, %s3
  // Predicated region
  $region2: #{discriminator_forward.4} parent=0 // pred_check
    _
  $region3: #{discriminator_forward.4} parent=0 // pred_check_branch
    %8 = sbr.rel (0) target = $region5
  $region4: #{discriminator_forward.4} parent=0 // pred_region
    _
  $region5: #{discriminator_forward.4} parent=0 // pred_fallthru
    _
  // Predicated region
  $region6: #{discriminator_forward.4} parent=0 // pred_check
    _
  $region7: #{discriminator_forward.4} parent=0 // pred_check_branch
    %10 = sbr.rel (0) target = $region9
  $region8: #{discriminator_forward.4} parent=0 // pred_region
    _
  $region9: #{discriminator_forward.4} parent=0 // pred_fallthru
    _
  %v12 = vld [vmem:[%s1] sm:$0xf]
  %v13 = vld [vmem:[%s0] sm:$0xff]
  %v14 = vld [vmem:[%s0 + $0x8] sm:$0xff]
  %v15 = vld [vmem:[%s0 + $0x10] sm:$0xff]
  %v16 = vld [vmem:[%s0 + $0x18] sm:$0xff]
  %v17 = vld [vmem:[%s0 + $0x20] sm:$0xff]
  %v18 = vld [vmem:[%s0 + $0x28] sm:$0xff]
  %v19 = vld [vmem:[%s0 + $0x30] sm:$0xff]
  %v20 = vld [vmem:[%s0 + $0x38] sm:$0xff]
  %v21 = vld [vmem:[%s0 + $0x40] sm:$0xff]
  %v22 = vld [vmem:[%s0 + $0x48] sm:$0xff]
  %v23 = vld [vmem:[%s0 + $0x50] sm:$0xff]
  %v24 = vld [vmem:[%s0 + $0x58] sm:$0xff]
  %v25 = vld [vmem:[%s0 + $0x60] sm:$0xff]
  %v26 = vld [vmem:[%s0 + $0x68] sm:$0xff]
  %v27 = vld [vmem:[%s0 + $0x70] sm:$0xff]
  %v28 = vld [vmem:[%s0 + $0x78] sm:$0xff]
  %v29 = vld [vmem:[%s0 + $0x80] sm:$0xff]
  %v30 = vld [vmem:[%s0 + $0x88] sm:$0xff]
  %v31 = vld [vmem:[%s0 + $0x90] sm:$0xff]
  %v32 = vld [vmem:[%s0 + $0x98] sm:$0xff]
  %v33 = vld [vmem:[%s0 + $0xa0] sm:$0xff]
  %v34 = vld [vmem:[%s0 + $0xa8] sm:$0xff]
  %v35 = vld [vmem:[%s0 + $0xb0] sm:$0xff]
  %v36 = vld [vmem:[%s0 + $0xb8] sm:$0xff]
  %v37 = vld [vmem:[%s0 + $0xc0] sm:$0xff]
  %v38 = vld [vmem:[%s0 + $0xc8] sm:$0xff]
  %v39 = vld [vmem:[%s0 + $0xd0] sm:$0xff]
  %v40 = vld [vmem:[%s0 + $0xd8] sm:$0xff]
  %v41 = vld [vmem:[%s0 + $0xe0] sm:$0xff]
  %v42 = vld [vmem:[%s0 + $0xe8] sm:$0xff]
  %v43 = vld [vmem:[%s0 + $0xf0] sm:$0xff]
  %v44 = vld [vmem:[%s0 + $0xf8] sm:$0xff]
  %v45 = vld [vmem:[%s0 + $0x100] sm:$0xff]
  %v46 = vld [vmem:[%s0 + $0x108] sm:$0xff]
  %v47 = vld [vmem:[%s0 + $0x110] sm:$0xff]
  %v48 = vld [vmem:[%s0 + $0x118] sm:$0xff]
  %v49 = vld [vmem:[%s0 + $0x120] sm:$0xff]
  %v50 = vld [vmem:[%s0 + $0x128] sm:$0xff]
  %v51 = vld [vmem:[%s0 + $0x130] sm:$0xff]
  %v52 = vld [vmem:[%s0 + $0x138] sm:$0xff]
  %v53 = vld [vmem:[%s0 + $0x140] sm:$0xff]
  %v54 = vld [vmem:[%s0 + $0x148] sm:$0xff]
  %v55 = vld [vmem:[%s0 + $0x150] sm:$0xff]
  %v56 = vld [vmem:[%s0 + $0x158] sm:$0xff]
  %v57 = vld [vmem:[%s0 + $0x160] sm:$0xff]
  %v58 = vld [vmem:[%s0 + $0x168] sm:$0xff]
  %v59 = vld [vmem:[%s0 + $0x170] sm:$0xff]
  %v60 = vld [vmem:[%s0 + $0x178] sm:$0xff]
  %v61 = vld [vmem:[%s0 + $0x180] sm:$0xff]
  %v62 = vld [vmem:[%s0 + $0x188] sm:$0xff]
  %v63 = vld [vmem:[%s0 + $0x190] sm:$0xff]
  %v64 = vld [vmem:[%s0 + $0x198] sm:$0xff]
  %v65 = vld [vmem:[%s0 + $0x1a0] sm:$0xff]
  %v66 = vld [vmem:[%s0 + $0x1a8] sm:$0xff]
  %v67 = vld [vmem:[%s0 + $0x1b0] sm:$0xff]
  %v68 = vld [vmem:[%s0 + $0x1b8] sm:$0xff]
  %v69 = vld [vmem:[%s0 + $0x1c0] sm:$0xff]
  %v70 = vld [vmem:[%s0 + $0x1c8] sm:$0xff]
  %v71 = vld [vmem:[%s0 + $0x1d0] sm:$0xff]
  %v72 = vld [vmem:[%s0 + $0x1d8] sm:$0xff]
  %v73 = vld [vmem:[%s0 + $0x1e0] sm:$0xff]
  %v74 = vld [vmem:[%s0 + $0x1e8] sm:$0xff]
  %v75 = vld [vmem:[%s0 + $0x1f0] sm:$0xff]
  %v76 = vld [vmem:[%s0 + $0x1f8] sm:$0xff]
  %v77 = vld [vmem:[%s0 + $0x200] sm:$0xff]
  %v78 = vld [vmem:[%s0 + $0x208] sm:$0xff]
  %v79 = vld [vmem:[%s0 + $0x210] sm:$0xff]
  %v80 = vld [vmem:[%s0 + $0x218] sm:$0xff]
  %v81 = vld [vmem:[%s0 + $0x220] sm:$0xff]
  %v82 = vld [vmem:[%s0 + $0x228] sm:$0xff]
  %v83 = vld [vmem:[%s0 + $0x230] sm:$0xff]
  %v84 = vld [vmem:[%s0 + $0x238] sm:$0xff]
  %v85 = vld [vmem:[%s0 + $0x240] sm:$0xff]
  %v86 = vld [vmem:[%s0 + $0x248] sm:$0xff]
  %v87 = vld [vmem:[%s0 + $0x250] sm:$0xff]
  %v88 = vld [vmem:[%s0 + $0x258] sm:$0xff]
  %v89 = vld [vmem:[%s0 + $0x260] sm:$0xff]
  %v90 = vld [vmem:[%s0 + $0x268] sm:$0xff]
  %v91 = vld [vmem:[%s0 + $0x270] sm:$0xff]
  %v92 = vld [vmem:[%s0 + $0x278] sm:$0xff]
  %v93 = vld [vmem:[%s0 + $0x280] sm:$0xff]
  %v94 = vld [vmem:[%s0 + $0x288] sm:$0xff]
  %v95 = vld [vmem:[%s0 + $0x290] sm:$0xff]
  %v96 = vld [vmem:[%s0 + $0x298] sm:$0xff]
  %v97 = vld [vmem:[%s0 + $0x2a0] sm:$0xff]
  %v98 = vld [vmem:[%s0 + $0x2a8] sm:$0xff]
  %v99 = vld [vmem:[%s0 + $0x2b0] sm:$0xff]
  %v100 = vld [vmem:[%s0 + $0x2b8] sm:$0xff]
  %v101 = vld [vmem:[%s0 + $0x2c0] sm:$0xff]
  %v102 = vld [vmem:[%s0 + $0x2c8] sm:$0xff]
  %v103 = vld [vmem:[%s0 + $0x2d0] sm:$0xff]
  %v104 = vld [vmem:[%s0 + $0x2d8] sm:$0xff]
  %v105 = vld [vmem:[%s0 + $0x2e0] sm:$0xff]
  %v106 = vld [vmem:[%s0 + $0x2e8] sm:$0xff]
  %v107 = vld [vmem:[%s0 + $0x2f0] sm:$0xff]
  %v108 = vld [vmem:[%s0 + $0x2f8] sm:$0xff]
  %v109 = vld [vmem:[%s0 + $0x300] sm:$0xff]
  %v110 = vld [vmem:[%s0 + $0x308] sm:$0xff]
  %v111 = vld [vmem:[%s0 + $0x310] sm:$0xff]
  %v112 = vld [vmem:[%s0 + $0x318] sm:$0xff]
  %v113 = vld [vmem:[%s0 + $0x320] sm:$0xff]
  %v114 = vld [vmem:[%s0 + $0x328] sm:$0xff]
  %v115 = vld [vmem:[%s0 + $0x330] sm:$0xff]
  %v116 = vld [vmem:[%s0 + $0x338] sm:$0xff]
  %v117 = vld [vmem:[%s0 + $0x340] sm:$0xff]
  %v118 = vld [vmem:[%s0 + $0x348] sm:$0xff]
  %v119 = vld [vmem:[%s0 + $0x350] sm:$0xff]
  %v120 = vld [vmem:[%s0 + $0x358] sm:$0xff]
  %v121 = vld [vmem:[%s0 + $0x360] sm:$0xff]
  %v122 = vld [vmem:[%s0 + $0x368] sm:$0xff]
  %v123 = vld [vmem:[%s0 + $0x370] sm:$0xff]
  %v124 = vld [vmem:[%s0 + $0x378] sm:$0xff]
  %v125 = vld [vmem:[%s0 + $0x380] sm:$0xff]
  %v126 = vld [vmem:[%s0 + $0x388] sm:$0xff]
  %v127 = vld [vmem:[%s0 + $0x390] sm:$0xff]
  %v128 = vld [vmem:[%s0 + $0x398] sm:$0xff]
  %v129 = vld [vmem:[%s0 + $0x3a0] sm:$0xff]
  %v130 = vld [vmem:[%s0 + $0x3a8] sm:$0xff]
  %v131 = vld [vmem:[%s0 + $0x3b0] sm:$0xff]
  %v132 = vld [vmem:[%s0 + $0x3b8] sm:$0xff]
  %v133 = vld [vmem:[%s0 + $0x3c0] sm:$0xff]
  %v134 = vld [vmem:[%s0 + $0x3c8] sm:$0xff]
  %v135 = vld [vmem:[%s0 + $0x3d0] sm:$0xff]
  %v136 = vld [vmem:[%s0 + $0x3d8] sm:$0xff]
  %v137 = vld [vmem:[%s0 + $0x3e0] sm:$0xff]
  %v138 = vld [vmem:[%s0 + $0x3e8] sm:$0xff]
  %v139 = vld [vmem:[%s0 + $0x3f0] sm:$0xff]
  %v140 = vld [vmem:[%s0 + $0x3f8] sm:$0xff]
  %v269 = vunpack.c.l.b16 %v13
  %v270 = vunpack.c.h.b16 %v13
  %v271 = vunpack.c.l.b16 %v14
  %v272 = vunpack.c.h.b16 %v14
  %v273 = vunpack.c.l.b16 %v15
  %v274 = vunpack.c.h.b16 %v15
  %v275 = vunpack.c.l.b16 %v16
  %v276 = vunpack.c.h.b16 %v16
  %v277 = vunpack.c.l.b16 %v17
  %v278 = vunpack.c.h.b16 %v17
  %v279 = vunpack.c.l.b16 %v18
  %v280 = vunpack.c.h.b16 %v18
  %v281 = vunpack.c.l.b16 %v19
  %v282 = vunpack.c.h.b16 %v19
  %v283 = vunpack.c.l.b16 %v20
  %v284 = vunpack.c.h.b16 %v20
  %v285 = vunpack.c.l.b16 %v21
  %v286 = vunpack.c.h.b16 %v21
  %v287 = vunpack.c.l.b16 %v22
  %v288 = vunpack.c.h.b16 %v22
  %v289 = vunpack.c.l.b16 %v23
  %v290 = vunpack.c.h.b16 %v23
  %v291 = vunpack.c.l.b16 %v24
  %v292 = vunpack.c.h.b16 %v24
  %v293 = vunpack.c.l.b16 %v25
  %v294 = vunpack.c.h.b16 %v25
  %v295 = vunpack.c.l.b16 %v26
  %v296 = vunpack.c.h.b16 %v26
  %v297 = vunpack.c.l.b16 %v27
  %v298 = vunpack.c.h.b16 %v27
  %v299 = vunpack.c.l.b16 %v28
  %v300 = vunpack.c.h.b16 %v28
  %v301 = vunpack.c.l.b16 %v29
  %v302 = vunpack.c.h.b16 %v29
  %v303 = vunpack.c.l.b16 %v30
  %v304 = vunpack.c.h.b16 %v30
  %v305 = vunpack.c.l.b16 %v31
  %v306 = vunpack.c.h.b16 %v31
  %v307 = vunpack.c.l.b16 %v32
  %v308 = vunpack.c.h.b16 %v32
  %v309 = vunpack.c.l.b16 %v33
  %v310 = vunpack.c.h.b16 %v33
  %v311 = vunpack.c.l.b16 %v34
  %v312 = vunpack.c.h.b16 %v34
  %v313 = vunpack.c.l.b16 %v35
  %v314 = vunpack.c.h.b16 %v35
  %v315 = vunpack.c.l.b16 %v36
  %v316 = vunpack.c.h.b16 %v36
  %v317 = vunpack.c.l.b16 %v37
  %v318 = vunpack.c.h.b16 %v37
  %v319 = vunpack.c.l.b16 %v38
  %v320 = vunpack.c.h.b16 %v38
  %v321 = vunpack.c.l.b16 %v39
  %v322 = vunpack.c.h.b16 %v39
  %v323 = vunpack.c.l.b16 %v40
  %v324 = vunpack.c.h.b16 %v40
  %v325 = vunpack.c.l.b16 %v41
  %v326 = vunpack.c.h.b16 %v41
  %v327 = vunpack.c.l.b16 %v42
  %v328 = vunpack.c.h.b16 %v42
  %v329 = vunpack.c.l.b16 %v43
  %v330 = vunpack.c.h.b16 %v43
  %v331 = vunpack.c.l.b16 %v44
  %v332 = vunpack.c.h.b16 %v44
  %v333 = vunpack.c.l.b16 %v45
  %v334 = vunpack.c.h.b16 %v45
  %v335 = vunpack.c.l.b16 %v46
  %v336 = vunpack.c.h.b16 %v46
  %v337 = vunpack.c.l.b16 %v47
  %v338 = vunpack.c.h.b16 %v47
  %v339 = vunpack.c.l.b16 %v48
  %v340 = vunpack.c.h.b16 %v48
  %v341 = vunpack.c.l.b16 %v49
  %v342 = vunpack.c.h.b16 %v49
  %v343 = vunpack.c.l.b16 %v50
  %v344 = vunpack.c.h.b16 %v50
  %v345 = vunpack.c.l.b16 %v51
  %v346 = vunpack.c.h.b16 %v51
  %v347 = vunpack.c.l.b16 %v52
  %v348 = vunpack.c.h.b16 %v52
  %v349 = vunpack.c.l.b16 %v53
  %v350 = vunpack.c.h.b16 %v53
  %v351 = vunpack.c.l.b16 %v54
  %v352 = vunpack.c.h.b16 %v54
  %v353 = vunpack.c.l.b16 %v55
  %v354 = vunpack.c.h.b16 %v55
  %v355 = vunpack.c.l.b16 %v56
  %v356 = vunpack.c.h.b16 %v56
  %v357 = vunpack.c.l.b16 %v57
  %v358 = vunpack.c.h.b16 %v57
  %v359 = vunpack.c.l.b16 %v58
  %v360 = vunpack.c.h.b16 %v58
  %v361 = vunpack.c.l.b16 %v59
  %v362 = vunpack.c.h.b16 %v59
  %v363 = vunpack.c.l.b16 %v60
  %v364 = vunpack.c.h.b16 %v60
  %v365 = vunpack.c.l.b16 %v61
  %v366 = vunpack.c.h.b16 %v61
  %v367 = vunpack.c.l.b16 %v62
  %v368 = vunpack.c.h.b16 %v62
  %v369 = vunpack.c.l.b16 %v63
  %v370 = vunpack.c.h.b16 %v63
  %v371 = vunpack.c.l.b16 %v64
  %v372 = vunpack.c.h.b16 %v64
  %v373 = vunpack.c.l.b16 %v65
  %v374 = vunpack.c.h.b16 %v65
  %v375 = vunpack.c.l.b16 %v66
  %v376 = vunpack.c.h.b16 %v66
  %v377 = vunpack.c.l.b16 %v67
  %v378 = vunpack.c.h.b16 %v67
  %v379 = vunpack.c.l.b16 %v68
  %v380 = vunpack.c.h.b16 %v68
  %v381 = vunpack.c.l.b16 %v69
  %v382 = vunpack.c.h.b16 %v69
  %v383 = vunpack.c.l.b16 %v70
  %v384 = vunpack.c.h.b16 %v70
  %v385 = vunpack.c.l.b16 %v71
  %v386 = vunpack.c.h.b16 %v71
  %v387 = vunpack.c.l.b16 %v72
  %v388 = vunpack.c.h.b16 %v72
  %v389 = vunpack.c.l.b16 %v73
  %v390 = vunpack.c.h.b16 %v73
  %v391 = vunpack.c.l.b16 %v74
  %v392 = vunpack.c.h.b16 %v74
  %v393 = vunpack.c.l.b16 %v75
  %v394 = vunpack.c.h.b16 %v75
  %v395 = vunpack.c.l.b16 %v76
  %v396 = vunpack.c.h.b16 %v76
  %v397 = vunpack.c.l.b16 %v77
  %v398 = vunpack.c.h.b16 %v77
  %v399 = vunpack.c.l.b16 %v78
  %v400 = vunpack.c.h.b16 %v78
  %v401 = vunpack.c.l.b16 %v79
  %v402 = vunpack.c.h.b16 %v79
  %v403 = vunpack.c.l.b16 %v80
  %v404 = vunpack.c.h.b16 %v80
  %v405 = vunpack.c.l.b16 %v81
  %v406 = vunpack.c.h.b16 %v81
  %v407 = vunpack.c.l.b16 %v82
  %v408 = vunpack.c.h.b16 %v82
  %v409 = vunpack.c.l.b16 %v83
  %v410 = vunpack.c.h.b16 %v83
  %v411 = vunpack.c.l.b16 %v84
  %v412 = vunpack.c.h.b16 %v84
  %v413 = vunpack.c.l.b16 %v85
  %v414 = vunpack.c.h.b16 %v85
  %v415 = vunpack.c.l.b16 %v86
  %v416 = vunpack.c.h.b16 %v86
  %v417 = vunpack.c.l.b16 %v87
  %v418 = vunpack.c.h.b16 %v87
  %v419 = vunpack.c.l.b16 %v88
  %v420 = vunpack.c.h.b16 %v88
  %v421 = vunpack.c.l.b16 %v89
  %v422 = vunpack.c.h.b16 %v89
  %v423 = vunpack.c.l.b16 %v90
  %v424 = vunpack.c.h.b16 %v90
  %v425 = vunpack.c.l.b16 %v91
  %v426 = vunpack.c.h.b16 %v91
  %v427 = vunpack.c.l.b16 %v92
  %v428 = vunpack.c.h.b16 %v92
  %v429 = vunpack.c.l.b16 %v93
  %v430 = vunpack.c.h.b16 %v93
  %v431 = vunpack.c.l.b16 %v94
  %v432 = vunpack.c.h.b16 %v94
  %v433 = vunpack.c.l.b16 %v95
  %v434 = vunpack.c.h.b16 %v95
  %v435 = vunpack.c.l.b16 %v96
  %v436 = vunpack.c.h.b16 %v96
  %v437 = vunpack.c.l.b16 %v97
  %v438 = vunpack.c.h.b16 %v97
  %v439 = vunpack.c.l.b16 %v98
  %v440 = vunpack.c.h.b16 %v98
  %v441 = vunpack.c.l.b16 %v99
  %v442 = vunpack.c.h.b16 %v99
  %v443 = vunpack.c.l.b16 %v100
  %v444 = vunpack.c.h.b16 %v100
  %v445 = vunpack.c.l.b16 %v101
  %v446 = vunpack.c.h.b16 %v101
  %v447 = vunpack.c.l.b16 %v102
  %v448 = vunpack.c.h.b16 %v102
  %v449 = vunpack.c.l.b16 %v103
  %v450 = vunpack.c.h.b16 %v103
  %v451 = vunpack.c.l.b16 %v104
  %v452 = vunpack.c.h.b16 %v104
  %v453 = vunpack.c.l.b16 %v105
  %v454 = vunpack.c.h.b16 %v105
  %v455 = vunpack.c.l.b16 %v106
  %v456 = vunpack.c.h.b16 %v106
  %v457 = vunpack.c.l.b16 %v107
  %v458 = vunpack.c.h.b16 %v107
  %v459 = vunpack.c.l.b16 %v108
  %v460 = vunpack.c.h.b16 %v108
  %v461 = vunpack.c.l.b16 %v109
  %v462 = vunpack.c.h.b16 %v109
  %v463 = vunpack.c.l.b16 %v110
  %v464 = vunpack.c.h.b16 %v110
  %v465 = vunpack.c.l.b16 %v111
  %v466 = vunpack.c.h.b16 %v111
  %v467 = vunpack.c.l.b16 %v112
  %v468 = vunpack.c.h.b16 %v112
  %v469 = vunpack.c.l.b16 %v113
  %v470 = vunpack.c.h.b16 %v113
  %v471 = vunpack.c.l.b16 %v114
  %v472 = vunpack.c.h.b16 %v114
  %v473 = vunpack.c.l.b16 %v115
  %v474 = vunpack.c.h.b16 %v115
  %v475 = vunpack.c.l.b16 %v116
  %v476 = vunpack.c.h.b16 %v116
  %v477 = vunpack.c.l.b16 %v117
  %v478 = vunpack.c.h.b16 %v117
  %v479 = vunpack.c.l.b16 %v118
  %v480 = vunpack.c.h.b16 %v118
  %v481 = vunpack.c.l.b16 %v119
  %v482 = vunpack.c.h.b16 %v119
  %v483 = vunpack.c.l.b16 %v120
  %v484 = vunpack.c.h.b16 %v120
  %v485 = vunpack.c.l.b16 %v121
  %v486 = vunpack.c.h.b16 %v121
  %v487 = vunpack.c.l.b16 %v122
  %v488 = vunpack.c.h.b16 %v122
  %v489 = vunpack.c.l.b16 %v123
  %v490 = vunpack.c.h.b16 %v123
  %v491 = vunpack.c.l.b16 %v124
  %v492 = vunpack.c.h.b16 %v124
  %v493 = vunpack.c.l.b16 %v125
  %v494 = vunpack.c.h.b16 %v125
  %v495 = vunpack.c.l.b16 %v126
  %v496 = vunpack.c.h.b16 %v126
  %v497 = vunpack.c.l.b16 %v127
  %v498 = vunpack.c.h.b16 %v127
  %v499 = vunpack.c.l.b16 %v128
  %v500 = vunpack.c.h.b16 %v128
  %v501 = vunpack.c.l.b16 %v129
  %v502 = vunpack.c.h.b16 %v129
  %v503 = vunpack.c.l.b16 %v130
  %v504 = vunpack.c.h.b16 %v130
  %v505 = vunpack.c.l.b16 %v131
  %v506 = vunpack.c.h.b16 %v131
  %v507 = vunpack.c.l.b16 %v132
  %v508 = vunpack.c.h.b16 %v132
  %v509 = vunpack.c.l.b16 %v133
  %v510 = vunpack.c.h.b16 %v133
  %v511 = vunpack.c.l.b16 %v134
  %v512 = vunpack.c.h.b16 %v134
  %v513 = vunpack.c.l.b16 %v135
  %v514 = vunpack.c.h.b16 %v135
  %v515 = vunpack.c.l.b16 %v136
  %v516 = vunpack.c.h.b16 %v136
  %v517 = vunpack.c.l.b16 %v137
  %v518 = vunpack.c.h.b16 %v137
  %v519 = vunpack.c.l.b16 %v138
  %v520 = vunpack.c.h.b16 %v138
  %v521 = vunpack.c.l.b16 %v139
  %v522 = vunpack.c.h.b16 %v139
  %v523 = vunpack.c.l.b16 %v140
  %v524 = vunpack.c.h.b16 %v140
  %v525 = vpack.c.b16 %v285, %v269
  %v526 = vpack.c.b16 %v286, %v270
  %v527 = vpack.c.b16 %v287, %v271
  %v528 = vpack.c.b16 %v288, %v272
  %v529 = vpack.c.b16 %v289, %v273
  %v530 = vpack.c.b16 %v290, %v274
  %v531 = vpack.c.b16 %v291, %v275
  %v532 = vpack.c.b16 %v292, %v276
  %v533 = vpack.c.b16 %v293, %v277
  %v534 = vpack.c.b16 %v294, %v278
  %v535 = vpack.c.b16 %v295, %v279
  %v536 = vpack.c.b16 %v296, %v280
  %v537 = vpack.c.b16 %v297, %v281
  %v538 = vpack.c.b16 %v298, %v282
  %v539 = vpack.c.b16 %v299, %v283
  %v540 = vpack.c.b16 %v300, %v284
  %v541 = vpack.c.b16 %v317, %v301
  %v542 = vpack.c.b16 %v318, %v302
  %v543 = vpack.c.b16 %v319, %v303
  %v544 = vpack.c.b16 %v320, %v304
  %v545 = vpack.c.b16 %v321, %v305
  %v546 = vpack.c.b16 %v322, %v306
  %v547 = vpack.c.b16 %v323, %v307
  %v548 = vpack.c.b16 %v324, %v308
  %v549 = vpack.c.b16 %v325, %v309
  %v550 = vpack.c.b16 %v326, %v310
  %v551 = vpack.c.b16 %v327, %v311
  %v552 = vpack.c.b16 %v328, %v312
  %v553 = vpack.c.b16 %v329, %v313
  %v554 = vpack.c.b16 %v330, %v314
  %v555 = vpack.c.b16 %v331, %v315
  %v556 = vpack.c.b16 %v332, %v316
  %v557 = vpack.c.b16 %v349, %v333
  %v558 = vpack.c.b16 %v350, %v334
  %v559 = vpack.c.b16 %v351, %v335
  %v560 = vpack.c.b16 %v352, %v336
  %v561 = vpack.c.b16 %v353, %v337
  %v562 = vpack.c.b16 %v354, %v338
  %v563 = vpack.c.b16 %v355, %v339
  %v564 = vpack.c.b16 %v356, %v340
  %v565 = vpack.c.b16 %v357, %v341
  %v566 = vpack.c.b16 %v358, %v342
  %v567 = vpack.c.b16 %v359, %v343
  %v568 = vpack.c.b16 %v360, %v344
  %v569 = vpack.c.b16 %v361, %v345
  %v570 = vpack.c.b16 %v362, %v346
  %v571 = vpack.c.b16 %v363, %v347
  %v572 = vpack.c.b16 %v364, %v348
  %v573 = vpack.c.b16 %v381, %v365
  %v574 = vpack.c.b16 %v382, %v366
  %v575 = vpack.c.b16 %v383, %v367
  %v576 = vpack.c.b16 %v384, %v368
  %v577 = vpack.c.b16 %v385, %v369
  %v578 = vpack.c.b16 %v386, %v370
  %v579 = vpack.c.b16 %v387, %v371
  %v580 = vpack.c.b16 %v388, %v372
  %v581 = vpack.c.b16 %v389, %v373
  %v582 = vpack.c.b16 %v390, %v374
  %v583 = vpack.c.b16 %v391, %v375
  %v584 = vpack.c.b16 %v392, %v376
  %v585 = vpack.c.b16 %v393, %v377
  %v586 = vpack.c.b16 %v394, %v378
  %v587 = vpack.c.b16 %v395, %v379
  %v588 = vpack.c.b16 %v396, %v380
  %v589 = vpack.c.b16 %v413, %v397
  %v590 = vpack.c.b16 %v414, %v398
  %v591 = vpack.c.b16 %v415, %v399
  %v592 = vpack.c.b16 %v416, %v400
  %v593 = vpack.c.b16 %v417, %v401
  %v594 = vpack.c.b16 %v418, %v402
  %v595 = vpack.c.b16 %v419, %v403
  %v596 = vpack.c.b16 %v420, %v404
  %v597 = vpack.c.b16 %v421, %v405
  %v598 = vpack.c.b16 %v422, %v406
  %v599 = vpack.c.b16 %v423, %v407
  %v600 = vpack.c.b16 %v424, %v408
  %v601 = vpack.c.b16 %v425, %v409
  %v602 = vpack.c.b16 %v426, %v410
  %v603 = vpack.c.b16 %v427, %v411
  %v604 = vpack.c.b16 %v428, %v412
  %v605 = vpack.c.b16 %v445, %v429
  %v606 = vpack.c.b16 %v446, %v430
  %v607 = vpack.c.b16 %v447, %v431
  %v608 = vpack.c.b16 %v448, %v432
  %v609 = vpack.c.b16 %v449, %v433
  %v610 = vpack.c.b16 %v450, %v434
  %v611 = vpack.c.b16 %v451, %v435
  %v612 = vpack.c.b16 %v452, %v436
  %v613 = vpack.c.b16 %v453, %v437
  %v614 = vpack.c.b16 %v454, %v438
  %v615 = vpack.c.b16 %v455, %v439
  %v616 = vpack.c.b16 %v456, %v440
  %v617 = vpack.c.b16 %v457, %v441
  %v618 = vpack.c.b16 %v458, %v442
  %v619 = vpack.c.b16 %v459, %v443
  %v620 = vpack.c.b16 %v460, %v444
  %v621 = vpack.c.b16 %v477, %v461
  %v622 = vpack.c.b16 %v478, %v462
  %v623 = vpack.c.b16 %v479, %v463
  %v624 = vpack.c.b16 %v480, %v464
  %v625 = vpack.c.b16 %v481, %v465
  %v626 = vpack.c.b16 %v482, %v466
  %v627 = vpack.c.b16 %v483, %v467
  %v628 = vpack.c.b16 %v484, %v468
  %v629 = vpack.c.b16 %v485, %v469
  %v630 = vpack.c.b16 %v486, %v470
  %v631 = vpack.c.b16 %v487, %v471
  %v632 = vpack.c.b16 %v488, %v472
  %v633 = vpack.c.b16 %v489, %v473
  %v634 = vpack.c.b16 %v490, %v474
  %v635 = vpack.c.b16 %v491, %v475
  %v636 = vpack.c.b16 %v492, %v476
  %v637 = vpack.c.b16 %v509, %v493
  %v638 = vpack.c.b16 %v510, %v494
  %v639 = vpack.c.b16 %v511, %v495
  %v640 = vpack.c.b16 %v512, %v496
  %v641 = vpack.c.b16 %v513, %v497
  %v642 = vpack.c.b16 %v514, %v498
  %v643 = vpack.c.b16 %v515, %v499
  %v644 = vpack.c.b16 %v516, %v500
  %v645 = vpack.c.b16 %v517, %v501
  %v646 = vpack.c.b16 %v518, %v502
  %v647 = vpack.c.b16 %v519, %v503
  %v648 = vpack.c.b16 %v520, %v504
  %v649 = vpack.c.b16 %v521, %v505
  %v650 = vpack.c.b16 %v522, %v506
  %v651 = vpack.c.b16 %v523, %v507
  %v652 = vpack.c.b16 %v524, %v508
  %781 = vmatprep.subr.bf16.mxu0 %v526
  %782 = vmatpush1.bf16.msra.mxu0 %v525
  %783 = vmatprep.subr.bf16.mxu0 %v542
  %784 = vmatpush1.bf16.msra.mxu0 %v541
  %785 = vmatprep.subr.bf16.mxu0 %v558
  %786 = vmatpush1.bf16.msra.mxu0 %v557
  %787 = vmatprep.subr.bf16.mxu0 %v574
  %788 = vmatpush1.bf16.msra.mxu0 %v573
  %789 = vmatprep.subr.bf16.mxu0 %v590
  %790 = vmatpush1.bf16.msra.mxu0 %v589
  %791 = vmatprep.subr.bf16.mxu0 %v606
  %792 = vmatpush1.bf16.msra.mxu0 %v605
  %793 = vmatprep.subr.bf16.mxu0 %v622
  %794 = vmatpush1.bf16.msra.mxu0 %v621
  %795 = vmatprep.subr.bf16.mxu0 %v638
  %796 = vmatpush1.bf16.msra.mxu0 %v637
  %797 = vmatprep.subr.bf16.mxu0 0
  %798 = vmatpush1.bf16.msra.mxu0 0
  %799 = vmatprep.subr.bf16.mxu0 0
  %800 = vmatpush1.bf16.msra.mxu0 0
  %801 = vmatprep.subr.bf16.mxu0 0
  %802 = vmatpush1.bf16.msra.mxu0 0
  %803 = vmatprep.subr.bf16.mxu0 0
  %804 = vmatpush1.bf16.msra.mxu0 0
  %805 = vmatprep.subr.bf16.mxu0 0
  %806 = vmatpush1.bf16.msra.mxu0 0
  %807 = vmatprep.subr.bf16.mxu0 0
  %808 = vmatpush1.bf16.msra.mxu0 0
  %809 = vmatprep.subr.bf16.mxu0 0
  %810 = vmatpush1.bf16.msra.mxu0 0
  %811 = vmatprep.subr.bf16.mxu0 0
  %812 = vmatpush1.bf16.msra.mxu0 0
  %813 = vmatprep.mubr.bf16.mxu0 0
  %814 = vmatmul.mubr.bf16.gmra.mrb[0].mxu0 %v12
  %v815 = vpop.f32.mrb[0].mxu0
  %v816 = vadd.f32 0.0, %v815
  %v817 = vpop.f32.mrb[0].mxu0
  %v818 = vadd.f32 0.0, %v817
  %v819 = vpop.f32.mrb[0].mxu0
  %v820 = vpop.f32.mrb[0].mxu0
  %821 = vdwg.mxu0
  %822 = vmatprep.subr.bf16.mxu0 %v528
  %823 = vmatpush1.bf16.msra.mxu0 %v527
  %824 = vmatprep.subr.bf16.mxu0 %v544
  %825 = vmatpush1.bf16.msra.mxu0 %v543
  %826 = vmatprep.subr.bf16.mxu0 %v560
  %827 = vmatpush1.bf16.msra.mxu0 %v559
  %828 = vmatprep.subr.bf16.mxu0 %v576
  %829 = vmatpush1.bf16.msra.mxu0 %v575
  %830 = vmatprep.subr.bf16.mxu0 %v592
  %831 = vmatpush1.bf16.msra.mxu0 %v591
  %832 = vmatprep.subr.bf16.mxu0 %v608
  %833 = vmatpush1.bf16.msra.mxu0 %v607
  %834 = vmatprep.subr.bf16.mxu0 %v624
  %835 = vmatpush1.bf16.msra.mxu0 %v623
  %836 = vmatprep.subr.bf16.mxu0 %v640
  %837 = vmatpush1.bf16.msra.mxu0 %v639
  %838 = vmatprep.subr.bf16.mxu0 0
  %839 = vmatpush1.bf16.msra.mxu0 0
  %840 = vmatprep.subr.bf16.mxu0 0
  %841 = vmatpush1.bf16.msra.mxu0 0
  %842 = vmatprep.subr.bf16.mxu0 0
  %843 = vmatpush1.bf16.msra.mxu0 0
  %844 = vmatprep.subr.bf16.mxu0 0
  %845 = vmatpush1.bf16.msra.mxu0 0
  %846 = vmatprep.subr.bf16.mxu0 0
  %847 = vmatpush1.bf16.msra.mxu0 0
  %848 = vmatprep.subr.bf16.mxu0 0
  %849 = vmatpush1.bf16.msra.mxu0 0
  %850 = vmatprep.subr.bf16.mxu0 0
  %851 = vmatpush1.bf16.msra.mxu0 0
  %852 = vmatprep.subr.bf16.mxu0 0
  %853 = vmatpush1.bf16.msra.mxu0 0
  %854 = vmatprep.mubr.bf16.mxu0 0
  %855 = vmatmul.mubr.bf16.gmra.mrb[0].mxu0 %v12
  %v856 = vpop.f32.mrb[0].mxu0
  %v857 = vadd.f32 0.0, %v856
  %v858 = vpop.f32.mrb[0].mxu0
  %v859 = vadd.f32 0.0, %v858
  %v860 = vpop.f32.mrb[0].mxu0
  %v861 = vpop.f32.mrb[0].mxu0
  %862 = vdwg.mxu0
  %863 = vmatprep.subr.bf16.mxu0 %v530
  %864 = vmatpush1.bf16.msra.mxu0 %v529
  %865 = vmatprep.subr.bf16.mxu0 %v546
  %866 = vmatpush1.bf16.msra.mxu0 %v545
  %867 = vmatprep.subr.bf16.mxu0 %v562
  %868 = vmatpush1.bf16.msra.mxu0 %v561
  %869 = vmatprep.subr.bf16.mxu0 %v578
  %870 = vmatpush1.bf16.msra.mxu0 %v577
  %871 = vmatprep.subr.bf16.mxu0 %v594
  %872 = vmatpush1.bf16.msra.mxu0 %v593
  %873 = vmatprep.subr.bf16.mxu0 %v610
  %874 = vmatpush1.bf16.msra.mxu0 %v609
  %875 = vmatprep.subr.bf16.mxu0 %v626
  %876 = vmatpush1.bf16.msra.mxu0 %v625
  %877 = vmatprep.subr.bf16.mxu0 %v642
  %878 = vmatpush1.bf16.msra.mxu0 %v641
  %879 = vmatprep.subr.bf16.mxu0 0
  %880 = vmatpush1.bf16.msra.mxu0 0
  %881 = vmatprep.subr.bf16.mxu0 0
  %882 = vmatpush1.bf16.msra.mxu0 0
  %883 = vmatprep.subr.bf16.mxu0 0
  %884 = vmatpush1.bf16.msra.mxu0 0
  %885 = vmatprep.subr.bf16.mxu0 0
  %886 = vmatpush1.bf16.msra.mxu0 0
  %887 = vmatprep.subr.bf16.mxu0 0
  %888 = vmatpush1.bf16.msra.mxu0 0
  %889 = vmatprep.subr.bf16.mxu0 0
  %890 = vmatpush1.bf16.msra.mxu0 0
  %891 = vmatprep.subr.bf16.mxu0 0
  %892 = vmatpush1.bf16.msra.mxu0 0
  %893 = vmatprep.subr.bf16.mxu0 0
  %894 = vmatpush1.bf16.msra.mxu0 0
  %895 = vmatprep.mubr.bf16.mxu0 0
  %896 = vmatmul.mubr.bf16.gmra.mrb[0].mxu0 %v12
  %v897 = vpop.f32.mrb[0].mxu0
  %v898 = vadd.f32 0.0, %v897
  %v899 = vpop.f32.mrb[0].mxu0
  %v900 = vadd.f32 0.0, %v899
  %v901 = vpop.f32.mrb[0].mxu0
  %v902 = vpop.f32.mrb[0].mxu0
  %903 = vdwg.mxu0
  %904 = vmatprep.subr.bf16.mxu0 %v532
  %905 = vmatpush1.bf16.msra.mxu0 %v531
  %906 = vmatprep.subr.bf16.mxu0 %v548
  %907 = vmatpush1.bf16.msra.mxu0 %v547
  %908 = vmatprep.subr.bf16.mxu0 %v564
  %909 = vmatpush1.bf16.msra.mxu0 %v563
  %910 = vmatprep.subr.bf16.mxu0 %v580
  %911 = vmatpush1.bf16.msra.mxu0 %v579
  %912 = vmatprep.subr.bf16.mxu0 %v596
  %913 = vmatpush1.bf16.msra.mxu0 %v595
  %914 = vmatprep.subr.bf16.mxu0 %v612
  %915 = vmatpush1.bf16.msra.mxu0 %v611
  %916 = vmatprep.subr.bf16.mxu0 %v628
  %917 = vmatpush1.bf16.msra.mxu0 %v627
  %918 = vmatprep.subr.bf16.mxu0 %v644
  %919 = vmatpush1.bf16.msra.mxu0 %v643
  %920 = vmatprep.subr.bf16.mxu0 0
  %921 = vmatpush1.bf16.msra.mxu0 0
  %922 = vmatprep.subr.bf16.mxu0 0
  %923 = vmatpush1.bf16.msra.mxu0 0
  %924 = vmatprep.subr.bf16.mxu0 0
  %925 = vmatpush1.bf16.msra.mxu0 0
  %926 = vmatprep.subr.bf16.mxu0 0
  %927 = vmatpush1.bf16.msra.mxu0 0
  %928 = vmatprep.subr.bf16.mxu0 0
  %929 = vmatpush1.bf16.msra.mxu0 0
  %930 = vmatprep.subr.bf16.mxu0 0
  %931 = vmatpush1.bf16.msra.mxu0 0
  %932 = vmatprep.subr.bf16.mxu0 0
  %933 = vmatpush1.bf16.msra.mxu0 0
  %934 = vmatprep.subr.bf16.mxu0 0
  %935 = vmatpush1.bf16.msra.mxu0 0
  %936 = vmatprep.mubr.bf16.mxu0 0
  %937 = vmatmul.mubr.bf16.gmra.mrb[0].mxu0 %v12
  %v938 = vpop.f32.mrb[0].mxu0
  %v939 = vadd.f32 0.0, %v938
  %v940 = vpop.f32.mrb[0].mxu0
  %v941 = vadd.f32 0.0, %v940
  %v942 = vpop.f32.mrb[0].mxu0
  %v943 = vpop.f32.mrb[0].mxu0
  %944 = vdwg.mxu0
  %945 = vmatprep.subr.bf16.mxu0 %v534
  %946 = vmatpush1.bf16.msra.mxu0 %v533
  %947 = vmatprep.subr.bf16.mxu0 %v550
  %948 = vmatpush1.bf16.msra.mxu0 %v549
  %949 = vmatprep.subr.bf16.mxu0 %v566
  %950 = vmatpush1.bf16.msra.mxu0 %v565
  %951 = vmatprep.subr.bf16.mxu0 %v582
  %952 = vmatpush1.bf16.msra.mxu0 %v581
  %953 = vmatprep.subr.bf16.mxu0 %v598
  %954 = vmatpush1.bf16.msra.mxu0 %v597
  %955 = vmatprep.subr.bf16.mxu0 %v614
  %956 = vmatpush1.bf16.msra.mxu0 %v613
  %957 = vmatprep.subr.bf16.mxu0 %v630
  %958 = vmatpush1.bf16.msra.mxu0 %v629
  %959 = vmatprep.subr.bf16.mxu0 %v646
  %960 = vmatpush1.bf16.msra.mxu0 %v645
  %961 = vmatprep.subr.bf16.mxu0 0
  %962 = vmatpush1.bf16.msra.mxu0 0
  %963 = vmatprep.subr.bf16.mxu0 0
  %964 = vmatpush1.bf16.msra.mxu0 0
  %965 = vmatprep.subr.bf16.mxu0 0
  %966 = vmatpush1.bf16.msra.mxu0 0
  %967 = vmatprep.subr.bf16.mxu0 0
  %968 = vmatpush1.bf16.msra.mxu0 0
  %969 = vmatprep.subr.bf16.mxu0 0
  %970 = vmatpush1.bf16.msra.mxu0 0
  %971 = vmatprep.subr.bf16.mxu0 0
  %972 = vmatpush1.bf16.msra.mxu0 0
  %973 = vmatprep.subr.bf16.mxu0 0
  %974 = vmatpush1.bf16.msra.mxu0 0
  %975 = vmatprep.subr.bf16.mxu0 0
  %976 = vmatpush1.bf16.msra.mxu0 0
  %977 = vmatprep.mubr.bf16.mxu0 0
  %978 = vmatmul.mubr.bf16.gmra.mrb[0].mxu0 %v12
  %v979 = vpop.f32.mrb[0].mxu0
  %v980 = vadd.f32 0.0, %v979
  %v981 = vpop.f32.mrb[0].mxu0
  %v982 = vadd.f32 0.0, %v981
  %v983 = vpop.f32.mrb[0].mxu0
  %v984 = vpop.f32.mrb[0].mxu0
  %985 = vdwg.mxu0
  %986 = vmatprep.subr.bf16.mxu0 %v536
  %987 = vmatpush1.bf16.msra.mxu0 %v535
  %988 = vmatprep.subr.bf16.mxu0 %v552
  %989 = vmatpush1.bf16.msra.mxu0 %v551
  %990 = vmatprep.subr.bf16.mxu0 %v568
  %991 = vmatpush1.bf16.msra.mxu0 %v567
  %992 = vmatprep.subr.bf16.mxu0 %v584
  %993 = vmatpush1.bf16.msra.mxu0 %v583
  %994 = vmatprep.subr.bf16.mxu0 %v600
  %995 = vmatpush1.bf16.msra.mxu0 %v599
  %996 = vmatprep.subr.bf16.mxu0 %v616
  %997 = vmatpush1.bf16.msra.mxu0 %v615
  %998 = vmatprep.subr.bf16.mxu0 %v632
  %999 = vmatpush1.bf16.msra.mxu0 %v631
  %1000 = vmatprep.subr.bf16.mxu0 %v648
  %1001 = vmatpush1.bf16.msra.mxu0 %v647
  %1002 = vmatprep.subr.bf16.mxu0 0
  %1003 = vmatpush1.bf16.msra.mxu0 0
  %1004 = vmatprep.subr.bf16.mxu0 0
  %1005 = vmatpush1.bf16.msra.mxu0 0
  %1006 = vmatprep.subr.bf16.mxu0 0
  %1007 = vmatpush1.bf16.msra.mxu0 0
  %1008 = vmatprep.subr.bf16.mxu0 0
  %1009 = vmatpush1.bf16.msra.mxu0 0
  %1010 = vmatprep.subr.bf16.mxu0 0
  %1011 = vmatpush1.bf16.msra.mxu0 0
  %1012 = vmatprep.subr.bf16.mxu0 0
  %1013 = vmatpush1.bf16.msra.mxu0 0
  %1014 = vmatprep.subr.bf16.mxu0 0
  %1015 = vmatpush1.bf16.msra.mxu0 0
  %1016 = vmatprep.subr.bf16.mxu0 0
  %1017 = vmatpush1.bf16.msra.mxu0 0
  %1018 = vmatprep.mubr.bf16.mxu0 0
  %1019 = vmatmul.mubr.bf16.gmra.mrb[0].mxu0 %v12
  %v1020 = vpop.f32.mrb[0].mxu0
  %v1021 = vadd.f32 0.0, %v1020
  %v1022 = vpop.f32.mrb[0].mxu0
  %v1023 = vadd.f32 0.0, %v1022
  %v1024 = vpop.f32.mrb[0].mxu0
  %v1025 = vpop.f32.mrb[0].mxu0
  %1026 = vdwg.mxu0
  %1027 = vmatprep.subr.bf16.mxu0 %v538
  %1028 = vmatpush1.bf16.msra.mxu0 %v537
  %1029 = vmatprep.subr.bf16.mxu0 %v554
  %1030 = vmatpush1.bf16.msra.mxu0 %v553
  %1031 = vmatprep.subr.bf16.mxu0 %v570
  %1032 = vmatpush1.bf16.msra.mxu0 %v569
  %1033 = vmatprep.subr.bf16.mxu0 %v586
  %1034 = vmatpush1.bf16.msra.mxu0 %v585
  %1035 = vmatprep.subr.bf16.mxu0 %v602
  %1036 = vmatpush1.bf16.msra.mxu0 %v601
  %1037 = vmatprep.subr.bf16.mxu0 %v618
  %1038 = vmatpush1.bf16.msra.mxu0 %v617
  %1039 = vmatprep.subr.bf16.mxu0 %v634
  %1040 = vmatpush1.bf16.msra.mxu0 %v633
  %1041 = vmatprep.subr.bf16.mxu0 %v650
  %1042 = vmatpush1.bf16.msra.mxu0 %v649
  %1043 = vmatprep.subr.bf16.mxu0 0
  %1044 = vmatpush1.bf16.msra.mxu0 0
  %1045 = vmatprep.subr.bf16.mxu0 0
  %1046 = vmatpush1.bf16.msra.mxu0 0
  %1047 = vmatprep.subr.bf16.mxu0 0
  %1048 = vmatpush1.bf16.msra.mxu0 0
  %1049 = vmatprep.subr.bf16.mxu0 0
  %1050 = vmatpush1.bf16.msra.mxu0 0
  %1051 = vmatprep.subr.bf16.mxu0 0
  %1052 = vmatpush1.bf16.msra.mxu0 0
  %1053 = vmatprep.subr.bf16.mxu0 0
  %1054 = vmatpush1.bf16.msra.mxu0 0
  %1055 = vmatprep.subr.bf16.mxu0 0
  %1056 = vmatpush1.bf16.msra.mxu0 0
  %1057 = vmatprep.subr.bf16.mxu0 0
  %1058 = vmatpush1.bf16.msra.mxu0 0
  %1059 = vmatprep.mubr.bf16.mxu0 0
  %1060 = vmatmul.mubr.bf16.gmra.mrb[0].mxu0 %v12
  %v1061 = vpop.f32.mrb[0].mxu0
  %v1062 = vadd.f32 0.0, %v1061
  %v1063 = vpop.f32.mrb[0].mxu0
  %v1064 = vadd.f32 0.0, %v1063
  %v1065 = vpop.f32.mrb[0].mxu0
  %v1066 = vpop.f32.mrb[0].mxu0
  %1067 = vdwg.mxu0
  %1068 = vmatprep.subr.bf16.mxu0 %v540
  %1069 = vmatpush1.bf16.msra.mxu0 %v539
  %1070 = vmatprep.subr.bf16.mxu0 %v556
  %1071 = vmatpush1.bf16.msra.mxu0 %v555
  %1072 = vmatprep.subr.bf16.mxu0 %v572
  %1073 = vmatpush1.bf16.msra.mxu0 %v571
  %1074 = vmatprep.subr.bf16.mxu0 %v588
  %1075 = vmatpush1.bf16.msra.mxu0 %v587
  %1076 = vmatprep.subr.bf16.mxu0 %v604
  %1077 = vmatpush1.bf16.msra.mxu0 %v603
  %1078 = vmatprep.subr.bf16.mxu0 %v620
  %1079 = vmatpush1.bf16.msra.mxu0 %v619
  %1080 = vmatprep.subr.bf16.mxu0 %v636
  %1081 = vmatpush1.bf16.msra.mxu0 %v635
  %1082 = vmatprep.subr.bf16.mxu0 %v652
  %1083 = vmatpush1.bf16.msra.mxu0 %v651
  %1084 = vmatprep.subr.bf16.mxu0 0
  %1085 = vmatpush1.bf16.msra.mxu0 0
  %1086 = vmatprep.subr.bf16.mxu0 0
  %1087 = vmatpush1.bf16.msra.mxu0 0
  %1088 = vmatprep.subr.bf16.mxu0 0
  %1089 = vmatpush1.bf16.msra.mxu0 0
  %1090 = vmatprep.subr.bf16.mxu0 0
  %1091 = vmatpush1.bf16.msra.mxu0 0
  %1092 = vmatprep.subr.bf16.mxu0 0
  %1093 = vmatpush1.bf16.msra.mxu0 0
  %1094 = vmatprep.subr.bf16.mxu0 0
  %1095 = vmatpush1.bf16.msra.mxu0 0
  %1096 = vmatprep.subr.bf16.mxu0 0
  %1097 = vmatpush1.bf16.msra.mxu0 0
  %1098 = vmatprep.subr.bf16.mxu0 0
  %1099 = vmatpush1.bf16.msra.mxu0 0
  %1100 = vmatprep.mubr.bf16.mxu0 0
  %1101 = vmatmul.mubr.bf16.gmra.mrb[0].mxu0 %v12
  %v1102 = vpop.f32.mrb[0].mxu0
  %v1103 = vadd.f32 0.0, %v1102
  %v1104 = vpop.f32.mrb[0].mxu0
  %v1105 = vadd.f32 0.0, %v1104
  %v1106 = vpop.f32.mrb[0].mxu0
  %v1107 = vpop.f32.mrb[0].mxu0
  %1108 = vdwg.mxu0
  %vm1109 = vcmp.ge.f32.partialorder %v816, 0.0
  %vm1110 = vcmp.ge.f32.partialorder %v818, 0.0
  %vm1111 = vcmp.ge.f32.partialorder %v857, 0.0
  %vm1112 = vcmp.ge.f32.partialorder %v859, 0.0
  %vm1113 = vcmp.ge.f32.partialorder %v898, 0.0
  %vm1114 = vcmp.ge.f32.partialorder %v900, 0.0
  %vm1115 = vcmp.ge.f32.partialorder %v939, 0.0
  %vm1116 = vcmp.ge.f32.partialorder %v941, 0.0
  %vm1117 = vcmp.ge.f32.partialorder %v980, 0.0
  %vm1118 = vcmp.ge.f32.partialorder %v982, 0.0
  %vm1119 = vcmp.ge.f32.partialorder %v1021, 0.0
  %vm1120 = vcmp.ge.f32.partialorder %v1023, 0.0
  %vm1121 = vcmp.ge.f32.partialorder %v1062, 0.0
  %vm1122 = vcmp.ge.f32.partialorder %v1064, 0.0
  %vm1123 = vcmp.ge.f32.partialorder %v1103, 0.0
  %vm1124 = vcmp.ge.f32.partialorder %v1105, 0.0
  %v1125 = vmul.f32 %v816, 0.2
  %v1126 = vmul.f32 %v818, 0.2
  %v1127 = vmul.f32 %v857, 0.2
  %v1128 = vmul.f32 %v859, 0.2
  %v1129 = vmul.f32 %v898, 0.2
  %v1130 = vmul.f32 %v900, 0.2
  %v1131 = vmul.f32 %v939, 0.2
  %v1132 = vmul.f32 %v941, 0.2
  %v1133 = vmul.f32 %v980, 0.2
  %v1134 = vmul.f32 %v982, 0.2
  %v1135 = vmul.f32 %v1021, 0.2
  %v1136 = vmul.f32 %v1023, 0.2
  %v1137 = vmul.f32 %v1062, 0.2
  %v1138 = vmul.f32 %v1064, 0.2
  %v1139 = vmul.f32 %v1103, 0.2
  %v1140 = vmul.f32 %v1105, 0.2
  %v1141 = vsel %vm1109, %v816, %v1125
  %v1142 = vsel %vm1110, %v818, %v1126
  %v1143 = vsel %vm1111, %v857, %v1127
  %v1144 = vsel %vm1112, %v859, %v1128
  %v1145 = vsel %vm1113, %v898, %v1129
  %v1146 = vsel %vm1114, %v900, %v1130
  %v1147 = vsel %vm1115, %v939, %v1131
  %v1148 = vsel %vm1116, %v941, %v1132
  %v1149 = vsel %vm1117, %v980, %v1133
  %v1150 = vsel %vm1118, %v982, %v1134
  %v1151 = vsel %vm1119, %v1021, %v1135
  %v1152 = vsel %vm1120, %v1023, %v1136
  %v1153 = vsel %vm1121, %v1062, %v1137
  %v1154 = vsel %vm1122, %v1064, %v1138
  %v1155 = vsel %vm1123, %v1103, %v1139
  %v1156 = vsel %vm1124, %v1105, %v1140
  %v1157 = vpack.c.bf16 %v1141, %v1141
  %v1158 = vpack.c.bf16 %v1142, %v1142
  %v1159 = vpack.c.bf16 %v1143, %v1143
  %v1160 = vpack.c.bf16 %v1144, %v1144
  %v1161 = vpack.c.bf16 %v1145, %v1145
  %v1162 = vpack.c.bf16 %v1146, %v1146
  %v1163 = vpack.c.bf16 %v1147, %v1147
  %v1164 = vpack.c.bf16 %v1148, %v1148
  %v1165 = vpack.c.bf16 %v1149, %v1149
  %v1166 = vpack.c.bf16 %v1150, %v1150
  %v1167 = vpack.c.bf16 %v1151, %v1151
  %v1168 = vpack.c.bf16 %v1152, %v1152
  %v1169 = vpack.c.bf16 %v1153, %v1153
  %v1170 = vpack.c.bf16 %v1154, %v1154
  %v1171 = vpack.c.bf16 %v1155, %v1155
  %v1172 = vpack.c.bf16 %v1156, %v1156
  %v1189 = vunpack.c.l.b16 %v1157
  %v1190 = vunpack.c.l.b16 %v1158
  %v1191 = vunpack.c.l.b16 %v1159
  %v1192 = vunpack.c.l.b16 %v1160
  %v1193 = vunpack.c.l.b16 %v1161
  %v1194 = vunpack.c.l.b16 %v1162
  %v1195 = vunpack.c.l.b16 %v1163
  %v1196 = vunpack.c.l.b16 %v1164
  %v1197 = vunpack.c.l.b16 %v1165
  %v1198 = vunpack.c.l.b16 %v1166
  %v1199 = vunpack.c.l.b16 %v1167
  %v1200 = vunpack.c.l.b16 %v1168
  %v1201 = vunpack.c.l.b16 %v1169
  %v1202 = vunpack.c.l.b16 %v1170
  %v1203 = vunpack.c.l.b16 %v1171
  %v1204 = vunpack.c.l.b16 %v1172
  %v1205 = vpack.c.b16 %v1190, %v1189
  %v1206 = vpack.c.b16 %v1192, %v1191
  %v1207 = vpack.c.b16 %v1194, %v1193
  %v1208 = vpack.c.b16 %v1196, %v1195
  %v1209 = vpack.c.b16 %v1198, %v1197
  %v1210 = vpack.c.b16 %v1200, %v1199
  %v1211 = vpack.c.b16 %v1202, %v1201
  %v1212 = vpack.c.b16 %v1204, %v1203
  %1221 = vst [vmem:[%s2] sm:$0xff] %v1205
  %1222 = vst [vmem:[%s2 + $0x8] sm:$0xff] %v1206
  %1223 = vst [vmem:[%s2 + $0x10] sm:$0xff] %v1207
  %1224 = vst [vmem:[%s2 + $0x18] sm:$0xff] %v1208
  %1225 = vst [vmem:[%s2 + $0x20] sm:$0xff] %v1209
  %1226 = vst [vmem:[%s2 + $0x28] sm:$0xff] %v1210
  %1227 = vst [vmem:[%s2 + $0x30] sm:$0xff] %v1211
  %1228 = vst [vmem:[%s2 + $0x38] sm:$0xff] %v1212
  // Predicated region
  $region10: #{discriminator_forward.4} parent=0 // pred_check
    _
  $region11: #{discriminator_forward.4} parent=0 // pred_check_branch
    %1230 = sbr.rel (0) target = $region13
  $region12: #{discriminator_forward.4} parent=0 // pred_region
    _
  $region13: #{discriminator_forward.4} parent=0 // pred_fallthru
    _
  // Predicated region
  $region14: #{discriminator_forward.4} parent=0 // pred_check
    _
  $region15: #{discriminator_forward.4} parent=0 // pred_check_branch
    %1232 = sbr.rel (0) target = $region17
  $region16: #{discriminator_forward.4} parent=0 // pred_region
    _
  $region17: #{discriminator_forward.4} parent=0 // pred_fallthru
    _

// kernel: discriminator_forward.5
$region0: #{discriminator_forward.5}
  #allocation0 [shape = 'u32[]', space=smem, size = 0x4, offset = 0x4, fixed_abs, tag = 'smem constant byte address 0x4 - core index']
  #allocation1 [shape = 'u32[144,128]{1,0:T(1,128)}', space=vmem, size = 0x12000, scoped, tag = 'internal scratch']
  %s0 = inlined_call_operand.vmem [shape: bf16[128,512], index: 0, kind: input, shape index: {}]
  %s1 = inlined_call_operand.vmem [shape: bf16[16,128], index: 1, kind: input, shape index: {}]
  %s2 = inlined_call_operand.vmem [shape: f32[16,1], index: 2, kind: input, shape index: {}]
  %s3 = inlined_call_operand.vmem [shape: f32[16,1], index: 3, kind: input, shape index: {}]
  %s4 = inlined_call_operand.vmem [shape: bf16[16,512], index: 4, kind: output, shape index: {}]
  %s5 = sld [smem:[#allocation0]]
  $region26: #{discriminator_forward.5} parent=0
    _
  %s7 = ssub.s32 1, %s5
  %s8 = scalar_select 0, %s7, %s5
  // Predicated region
  $region2: #{discriminator_forward.5} parent=0 // pred_check
    _
  $region3: #{discriminator_forward.5} parent=0 // pred_check_branch
    %10 = sbr.rel (0) target = $region5
  $region4: #{discriminator_forward.5} parent=0 // pred_region
    _
  $region5: #{discriminator_forward.5} parent=0 // pred_fallthru
    _
  // Predicated region
  $region6: #{discriminator_forward.5} parent=0 // pred_check
    _
  $region7: #{discriminator_forward.5} parent=0 // pred_check_branch
    %12 = sbr.rel (0) target = $region9
  $region8: #{discriminator_forward.5} parent=0 // pred_region
    _
  $region9: #{discriminator_forward.5} parent=0 // pred_fallthru
    _
  // Predicated region
  $region10: #{discriminator_forward.5} parent=0 // pred_check
    _
  $region11: #{discriminator_forward.5} parent=0 // pred_check_branch
    %14 = sbr.rel (0) target = $region13
  $region12: #{discriminator_forward.5} parent=0 // pred_region
    _
  $region13: #{discriminator_forward.5} parent=0 // pred_fallthru
    _
  // Predicated region
  $region14: #{discriminator_forward.5} parent=0 // pred_check
    _
  $region15: #{discriminator_forward.5} parent=0 // pred_check_branch
    %16 = sbr.rel (0) target = $region17
  $region16: #{discriminator_forward.5} parent=0 // pred_region
    _
  $region17: #{discriminator_forward.5} parent=0 // pred_fallthru
    _
  %v18 = vld [vmem:[%s1] sm:$0xf]
  %v19 = vld [vmem:[%s1 + $0x4] sm:$0xf]
  %v20 = vld [vmem:[%s0] sm:$0xff]
  %v21 = vld [vmem:[%s0 + $0x8] sm:$0xff]
  %v22 = vld [vmem:[%s0 + $0x10] sm:$0xff]
  %v23 = vld [vmem:[%s0 + $0x18] sm:$0xff]
  %v24 = vld [vmem:[%s0 + $0x20] sm:$0xff]
  %v25 = vld [vmem:[%s0 + $0x28] sm:$0xff]
  %v26 = vld [vmem:[%s0 + $0x30] sm:$0xff]
  %v27 = vld [vmem:[%s0 + $0x38] sm:$0xff]
  %v28 = vld [vmem:[%s0 + $0x40] sm:$0xff]
  %v29 = vld [vmem:[%s0 + $0x48] sm:$0xff]
  %v30 = vld [vmem:[%s0 + $0x50] sm:$0xff]
  %v31 = vld [vmem:[%s0 + $0x58] sm:$0xff]
  %v32 = vld [vmem:[%s0 + $0x60] sm:$0xff]
  %v33 = vld [vmem:[%s0 + $0x68] sm:$0xff]
  %v34 = vld [vmem:[%s0 + $0x70] sm:$0xff]
  %v35 = vld [vmem:[%s0 + $0x78] sm:$0xff]
  %v36 = vld [vmem:[%s0 + $0x80] sm:$0xff]
  %v37 = vld [vmem:[%s0 + $0x88] sm:$0xff]
  %v38 = vld [vmem:[%s0 + $0x90] sm:$0xff]
  %v39 = vld [vmem:[%s0 + $0x98] sm:$0xff]
  %v40 = vld [vmem:[%s0 + $0xa0] sm:$0xff]
  %v41 = vld [vmem:[%s0 + $0xa8] sm:$0xff]
  %v42 = vld [vmem:[%s0 + $0xb0] sm:$0xff]
  %v43 = vld [vmem:[%s0 + $0xb8] sm:$0xff]
  %v44 = vld [vmem:[%s0 + $0xc0] sm:$0xff]
  %v45 = vld [vmem:[%s0 + $0xc8] sm:$0xff]
  %v46 = vld [vmem:[%s0 + $0xd0] sm:$0xff]
  %v47 = vld [vmem:[%s0 + $0xd8] sm:$0xff]
  %v48 = vld [vmem:[%s0 + $0xe0] sm:$0xff]
  %v49 = vld [vmem:[%s0 + $0xe8] sm:$0xff]
  %v50 = vld [vmem:[%s0 + $0xf0] sm:$0xff]
  %v51 = vld [vmem:[%s0 + $0xf8] sm:$0xff]
  %v54 = vunpack.c.l.b16 %v18
  %v55 = vunpack.c.l.b16 %v19
  %v56 = vpack.c.b16 %v55, %v54
  %v90 = vunpack.c.l.b16 %v20
  %v91 = vunpack.c.h.b16 %v20
  %v92 = vunpack.c.l.b16 %v21
  %v93 = vunpack.c.h.b16 %v21
  %v94 = vunpack.c.l.b16 %v22
  %v95 = vunpack.c.h.b16 %v22
  %v96 = vunpack.c.l.b16 %v23
  %v97 = vunpack.c.h.b16 %v23
  %v98 = vunpack.c.l.b16 %v24
  %v99 = vunpack.c.h.b16 %v24
  %v100 = vunpack.c.l.b16 %v25
  %v101 = vunpack.c.h.b16 %v25
  %v102 = vunpack.c.l.b16 %v26
  %v103 = vunpack.c.h.b16 %v26
  %v104 = vunpack.c.l.b16 %v27
  %v105 = vunpack.c.h.b16 %v27
  %v106 = vunpack.c.l.b16 %v28
  %v107 = vunpack.c.h.b16 %v28
  %v108 = vunpack.c.l.b16 %v29
  %v109 = vunpack.c.h.b16 %v29
  %v110 = vunpack.c.l.b16 %v30
  %v111 = vunpack.c.h.b16 %v30
  %v112 = vunpack.c.l.b16 %v31
  %v113 = vunpack.c.h.b16 %v31
  %v114 = vunpack.c.l.b16 %v32
  %v115 = vunpack.c.h.b16 %v32
  %v116 = vunpack.c.l.b16 %v33
  %v117 = vunpack.c.h.b16 %v33
  %v118 = vunpack.c.l.b16 %v34
  %v119 = vunpack.c.h.b16 %v34
  %v120 = vunpack.c.l.b16 %v35
  %v121 = vunpack.c.h.b16 %v35
  %v122 = vunpack.c.l.b16 %v36
  %v123 = vunpack.c.h.b16 %v36
  %v124 = vunpack.c.l.b16 %v37
  %v125 = vunpack.c.h.b16 %v37
  %v126 = vunpack.c.l.b16 %v38
  %v127 = vunpack.c.h.b16 %v38
  %v128 = vunpack.c.l.b16 %v39
  %v129 = vunpack.c.h.b16 %v39
  %v130 = vunpack.c.l.b16 %v40
  %v131 = vunpack.c.h.b16 %v40
  %v132 = vunpack.c.l.b16 %v41
  %v133 = vunpack.c.h.b16 %v41
  %v134 = vunpack.c.l.b16 %v42
  %v135 = vunpack.c.h.b16 %v42
  %v136 = vunpack.c.l.b16 %v43
  %v137 = vunpack.c.h.b16 %v43
  %v138 = vunpack.c.l.b16 %v44
  %v139 = vunpack.c.h.b16 %v44
  %v140 = vunpack.c.l.b16 %v45
  %v141 = vunpack.c.h.b16 %v45
  %v142 = vunpack.c.l.b16 %v46
  %v143 = vunpack.c.h.b16 %v46
  %v144 = vunpack.c.l.b16 %v47
  %v145 = vunpack.c.h.b16 %v47
  %v146 = vunpack.c.l.b16 %v48
  %v147 = vunpack.c.h.b16 %v48
  %v148 = vunpack.c.l.b16 %v49
  %v149 = vunpack.c.h.b16 %v49
  %v150 = vunpack.c.l.b16 %v50
  %v151 = vunpack.c.h.b16 %v50
  %v152 = vunpack.c.l.b16 %v51
  %v153 = vunpack.c.h.b16 %v51
  %v154 = vpack.c.b16 %v94, %v90
  %v155 = vpack.c.b16 %v95, %v91
  %v156 = vpack.c.b16 %v96, %v92
  %v157 = vpack.c.b16 %v97, %v93
  %v158 = vpack.c.b16 %v102, %v98
  %v159 = vpack.c.b16 %v103, %v99
  %v160 = vpack.c.b16 %v104, %v100
  %v161 = vpack.c.b16 %v105, %v101
  %v162 = vpack.c.b16 %v110, %v106
  %v163 = vpack.c.b16 %v111, %v107
  %v164 = vpack.c.b16 %v112, %v108
  %v165 = vpack.c.b16 %v113, %v109
  %v166 = vpack.c.b16 %v118, %v114
  %v167 = vpack.c.b16 %v119, %v115
  %v168 = vpack.c.b16 %v120, %v116
  %v169 = vpack.c.b16 %v121, %v117
  %v170 = vpack.c.b16 %v126, %v122
  %v171 = vpack.c.b16 %v127, %v123
  %v172 = vpack.c.b16 %v128, %v124
  %v173 = vpack.c.b16 %v129, %v125
  %v174 = vpack.c.b16 %v134, %v130
  %v175 = vpack.c.b16 %v135, %v131
  %v176 = vpack.c.b16 %v136, %v132
  %v177 = vpack.c.b16 %v137, %v133
  %v178 = vpack.c.b16 %v142, %v138
  %v179 = vpack.c.b16 %v143, %v139
  %v180 = vpack.c.b16 %v144, %v140
  %v181 = vpack.c.b16 %v145, %v141
  %v182 = vpack.c.b16 %v150, %v146
  %v183 = vpack.c.b16 %v151, %v147
  %v184 = vpack.c.b16 %v152, %v148
  %v185 = vpack.c.b16 %v153, %v149
  %218 = vmatprep.subr.bf16.mxu0 %v155
  %219 = vmatpush1.bf16.msra.mxu0 %v154
  %220 = vmatprep.subr.bf16.mxu0 %v159
  %221 = vmatpush1.bf16.msra.mxu0 %v158
  %222 = vmatprep.subr.bf16.mxu0 %v163
  %223 = vmatpush1.bf16.msra.mxu0 %v162
  %224 = vmatprep.subr.bf16.mxu0 %v167
  %225 = vmatpush1.bf16.msra.mxu0 %v166
  %226 = vmatprep.subr.bf16.mxu0 %v171
  %227 = vmatpush1.bf16.msra.mxu0 %v170
  %228 = vmatprep.subr.bf16.mxu0 %v175
  %229 = vmatpush1.bf16.msra.mxu0 %v174
  %230 = vmatprep.subr.bf16.mxu0 %v179
  %231 = vmatpush1.bf16.msra.mxu0 %v178
  %232 = vmatprep.subr.bf16.mxu0 %v183
  %233 = vmatpush1.bf16.msra.mxu0 %v182
  %234 = vmatprep.subr.bf16.mxu0 0
  %235 = vmatpush1.bf16.msra.mxu0 0
  %236 = vmatprep.subr.bf16.mxu0 0
  %237 = vmatpush1.bf16.msra.mxu0 0
  %238 = vmatprep.subr.bf16.mxu0 0
  %239 = vmatpush1.bf16.msra.mxu0 0
  %240 = vmatprep.subr.bf16.mxu0 0
  %241 = vmatpush1.bf16.msra.mxu0 0
  %242 = vmatprep.subr.bf16.mxu0 0
  %243 = vmatpush1.bf16.msra.mxu0 0
  %244 = vmatprep.subr.bf16.mxu0 0
  %245 = vmatpush1.bf16.msra.mxu0 0
  %246 = vmatprep.subr.bf16.mxu0 0
  %247 = vmatpush1.bf16.msra.mxu0 0
  %248 = vmatprep.subr.bf16.mxu0 0
  %249 = vmatpush1.bf16.msra.mxu0 0
  %250 = vmatprep.mubr.bf16.mxu0 0
  %251 = vmatmul.mubr.bf16.gmra.mrb[0].mxu0 %v56
  %v252 = vpop.f32.mrb[0].mxu0
  %v253 = vadd.f32 0.0, %v252
  %v254 = vpop.f32.mrb[0].mxu0
  %v255 = vadd.f32 0.0, %v254
  %v256 = vpop.f32.mrb[0].mxu0
  %v257 = vadd.f32 0.0, %v256
  %v258 = vpop.f32.mrb[0].mxu0
  %v259 = vadd.f32 0.0, %v258
  %260 = vdwg.mxu0
  %261 = vmatprep.subr.bf16.mxu0 %v157
  %262 = vmatpush1.bf16.msra.mxu0 %v156
  %263 = vmatprep.subr.bf16.mxu0 %v161
  %264 = vmatpush1.bf16.msra.mxu0 %v160
  %265 = vmatprep.subr.bf16.mxu0 %v165
  %266 = vmatpush1.bf16.msra.mxu0 %v164
  %267 = vmatprep.subr.bf16.mxu0 %v169
  %268 = vmatpush1.bf16.msra.mxu0 %v168
  %269 = vmatprep.subr.bf16.mxu0 %v173
  %270 = vmatpush1.bf16.msra.mxu0 %v172
  %271 = vmatprep.subr.bf16.mxu0 %v177
  %272 = vmatpush1.bf16.msra.mxu0 %v176
  %273 = vmatprep.subr.bf16.mxu0 %v181
  %274 = vmatpush1.bf16.msra.mxu0 %v180
  %275 = vmatprep.subr.bf16.mxu0 %v185
  %276 = vmatpush1.bf16.msra.mxu0 %v184
  %277 = vmatprep.subr.bf16.mxu0 0
  %278 = vmatpush1.bf16.msra.mxu0 0
  %279 = vmatprep.subr.bf16.mxu0 0
  %280 = vmatpush1.bf16.msra.mxu0 0
  %281 = vmatprep.subr.bf16.mxu0 0
  %282 = vmatpush1.bf16.msra.mxu0 0
  %283 = vmatprep.subr.bf16.mxu0 0
  %284 = vmatpush1.bf16.msra.mxu0 0
  %285 = vmatprep.subr.bf16.mxu0 0
  %286 = vmatpush1.bf16.msra.mxu0 0
  %287 = vmatprep.subr.bf16.mxu0 0
  %288 = vmatpush1.bf16.msra.mxu0 0
  %289 = vmatprep.subr.bf16.mxu0 0
  %290 = vmatpush1.bf16.msra.mxu0 0
  %291 = vmatprep.subr.bf16.mxu0 0
  %292 = vmatpush1.bf16.msra.mxu0 0
  %293 = vmatprep.mubr.bf16.mxu0 0
  %294 = vmatmul.mubr.bf16.gmra.mrb[0].mxu0 %v56
  %v295 = vpop.f32.mrb[0].mxu0
  %v296 = vadd.f32 0.0, %v295
  %v297 = vpop.f32.mrb[0].mxu0
  %v298 = vadd.f32 0.0, %v297
  %v299 = vpop.f32.mrb[0].mxu0
  %v300 = vadd.f32 0.0, %v299
  %v301 = vpop.f32.mrb[0].mxu0
  %v302 = vadd.f32 0.0, %v301
  %303 = vdwg.mxu0
  %v304 = vadd.f32 %v253, %v255
  %v305 = vadd.f32 %v304, %v296
  %v306 = vadd.f32 %v305, %v298
  %307 = vadd.xlane.f32.xlu0 %v306
  %v308 = vpop.xlane.xlu0 %307
  %v309 = vadd.f32 %v257, %v259
  %v310 = vadd.f32 %v309, %v300
  %v311 = vadd.f32 %v310, %v302
  %312 = vadd.xlane.f32.xlu0 %v311
  %v313 = vpop.xlane.xlu0 %312
  %v314 = vrcp.pop 512.0
  %v315 = vmul.f32 %v308, %v314
  %v316 = vmul.f32 %v313, %v314
  %v317 = vsub.f32 %v253, %v315
  %v318 = vsub.f32 %v255, %v315
  %v319 = vsub.f32 %v296, %v315
  %v320 = vsub.f32 %v298, %v315
  %v321 = vsub.f32 %v257, %v316
  %v322 = vsub.f32 %v259, %v316
  %v323 = vsub.f32 %v300, %v316
  %v324 = vsub.f32 %v302, %v316
  %v325 = vmul.f32 %v317, %v317
  %v326 = vmul.f32 %v318, %v318
  %v327 = vmul.f32 %v319, %v319
  %v328 = vmul.f32 %v320, %v320
  %v329 = vmul.f32 %v321, %v321
  %v330 = vmul.f32 %v322, %v322
  %v331 = vmul.f32 %v323, %v323
  %v332 = vmul.f32 %v324, %v324
  %v333 = vadd.f32 %v325, %v326
  %v334 = vadd.f32 %v333, %v327
  %v335 = vadd.f32 %v334, %v328
  %336 = vadd.xlane.f32.xlu0 %v335
  %v337 = vpop.xlane.xlu0 %336
  %v338 = vadd.f32 %v329, %v330
  %v339 = vadd.f32 %v338, %v331
  %v340 = vadd.f32 %v339, %v332
  %341 = vadd.xlane.f32.xlu0 %v340
  %v342 = vpop.xlane.xlu0 %341
  %v343 = vmul.f32 %v337, %v314
  %v344 = vmul.f32 %v342, %v314
  %v345 = vadd.f32 %v343, 1e-05
  %v346 = vadd.f32 %v344, 1e-05
  %v347 = vrsqrt.pop %v345
  %v348 = vrsqrt.pop %v346
  %v349 = vmul.f32 %v317, %v347
  %v350 = vmul.f32 %v318, %v347
  %v351 = vmul.f32 %v319, %v347
  %v352 = vmul.f32 %v320, %v347
  %v353 = vmul.f32 %v321, %v348
  %v354 = vmul.f32 %v322, %v348
  %v355 = vmul.f32 %v323, %v348
  %v356 = vmul.f32 %v324, %v348
  %v357 = vld [vmem:[%s2] sm:$0xff]
  %v358 = vld [vmem:[%s2 + $0x8] sm:$0xff]
  %360 = vset.pattern.permute.xlu0 0
  %361 = vperm.xlu0 %360, %v357
  %v362 = vpop.permute.xlu0 %361
  %365 = vset.pattern.permute.xlu0 0
  %366 = vperm.xlu0 %365, %v358
  %v367 = vpop.permute.xlu0 %366
  %v369 = vmul.f32 %v349, %v362
  %v370 = vmul.f32 %v350, %v362
  %v371 = vmul.f32 %v351, %v362
  %v372 = vmul.f32 %v352, %v362
  %v373 = vmul.f32 %v353, %v367
  %v374 = vmul.f32 %v354, %v367
  %v375 = vmul.f32 %v355, %v367
  %v376 = vmul.f32 %v356, %v367
  %v377 = vld [vmem:[%s3] sm:$0xff]
  %v378 = vld [vmem:[%s3 + $0x8] sm:$0xff]
  %380 = vset.pattern.permute.xlu0 0
  %381 = vperm.xlu0 %380, %v377
  %v382 = vpop.permute.xlu0 %381
  %385 = vset.pattern.permute.xlu0 0
  %386 = vperm.xlu0 %385, %v378
  %v387 = vpop.permute.xlu0 %386
  %v389 = vadd.f32 %v369, %v382
  %v390 = vadd.f32 %v370, %v382
  %v391 = vadd.f32 %v371, %v382
  %v392 = vadd.f32 %v372, %v382
  %v393 = vadd.f32 %v373, %v387
  %v394 = vadd.f32 %v374, %v387
  %v395 = vadd.f32 %v375, %v387
  %v396 = vadd.f32 %v376, %v387
  %vm397 = vcmp.ge.f32.partialorder %v389, 0.0
  %vm398 = vcmp.ge.f32.partialorder %v390, 0.0
  %vm399 = vcmp.ge.f32.partialorder %v391, 0.0
  %vm400 = vcmp.ge.f32.partialorder %v392, 0.0
  %vm401 = vcmp.ge.f32.partialorder %v393, 0.0
  %vm402 = vcmp.ge.f32.partialorder %v394, 0.0
  %vm403 = vcmp.ge.f32.partialorder %v395, 0.0
  %vm404 = vcmp.ge.f32.partialorder %v396, 0.0
  %v405 = vmul.f32 %v389, 0.2
  %v406 = vmul.f32 %v390, 0.2
  %v407 = vmul.f32 %v391, 0.2
  %v408 = vmul.f32 %v392, 0.2
  %v409 = vmul.f32 %v393, 0.2
  %v410 = vmul.f32 %v394, 0.2
  %v411 = vmul.f32 %v395, 0.2
  %v412 = vmul.f32 %v396, 0.2
  %v413 = vsel %vm397, %v389, %v405
  %v414 = vsel %vm398, %v390, %v406
  %v415 = vsel %vm399, %v391, %v407
  %v416 = vsel %vm400, %v392, %v408
  %v417 = vsel %vm401, %v393, %v409
  %v418 = vsel %vm402, %v394, %v410
  %v419 = vsel %vm403, %v395, %v411
  %v420 = vsel %vm404, %v396, %v412
  %v421 = vpack.c.bf16 %v417, %v413
  %v422 = vpack.c.bf16 %v418, %v414
  %v423 = vpack.c.bf16 %v419, %v415
  %v424 = vpack.c.bf16 %v420, %v416
  %v429 = vunpack.c.l.b16 %v421
  %v430 = vunpack.c.l.b16 %v422
  %v431 = vunpack.c.l.b16 %v423
  %v432 = vunpack.c.l.b16 %v424
  %v433 = vunpack.c.h.b16 %v421
  %v434 = vunpack.c.h.b16 %v422
  %v435 = vunpack.c.h.b16 %v423
  %v436 = vunpack.c.h.b16 %v424
  %v437 = vpack.c.b16 %v430, %v429
  %v438 = vpack.c.b16 %v432, %v431
  %v439 = vpack.c.b16 %v434, %v433
  %v440 = vpack.c.b16 %v436, %v435
  %445 = vst [vmem:[%s4] sm:$0xff] %v437
  %446 = vst [vmem:[%s4 + $0x8] sm:$0xff] %v438
  %447 = vst [vmem:[%s4 + $0x10] sm:$0xff] %v439
  %448 = vst [vmem:[%s4 + $0x18] sm:$0xff] %v440
  // Predicated region
  $region18: #{discriminator_forward.5} parent=0 // pred_check
    _
  $region19: #{discriminator_forward.5} parent=0 // pred_check_branch
    %450 = sbr.rel (0) target = $region21
  $region20: #{discriminator_forward.5} parent=0 // pred_region
    _
  $region21: #{discriminator_forward.5} parent=0 // pred_fallthru
    _
  // Predicated region
  $region22: #{discriminator_forward.5} parent=0 // pred_check
    _
  $region23: #{discriminator_forward.5} parent=0 // pred_check_branch
    %452 = sbr.rel (0) target = $region25
  $region24: #{discriminator_forward.5} parent=0 // pred_region
    _
  $region25: #{discriminator_forward.5} parent=0 // pred_fallthru
    _

// kernel: discriminator_forward.6
$region0: #{discriminator_forward.6}
  #allocation0 [shape = 'u32[]', space=smem, size = 0x4, offset = 0x4, fixed_abs, tag = 'smem constant byte address 0x4 - core index']
  #allocation1 [shape = 'u32[144,128]{1,0:T(1,128)}', space=vmem, size = 0x12000, scoped, tag = 'internal scratch']
  %s0 = inlined_call_operand.vmem [shape: bf16[256,128], index: 0, kind: input, shape index: {}]
  %s1 = inlined_call_operand.vmem [shape: bf16[32,256], index: 1, kind: input, shape index: {}]
  %s2 = inlined_call_operand.vmem [shape: f32[32,1], index: 2, kind: input, shape index: {}]
  %s3 = inlined_call_operand.vmem [shape: f32[32,1], index: 3, kind: input, shape index: {}]
  %s4 = inlined_call_operand.vmem [shape: bf16[32,128], index: 4, kind: output, shape index: {}]
  %s5 = sld [smem:[#allocation0]]
  $region26: #{discriminator_forward.6} parent=0
    _
  %s7 = ssub.s32 1, %s5
  %s8 = scalar_select 0, %s7, %s5
  // Predicated region
  $region2: #{discriminator_forward.6} parent=0 // pred_check
    _
  $region3: #{discriminator_forward.6} parent=0 // pred_check_branch
    %10 = sbr.rel (0) target = $region5
  $region4: #{discriminator_forward.6} parent=0 // pred_region
    _
  $region5: #{discriminator_forward.6} parent=0 // pred_fallthru
    _
  // Predicated region
  $region6: #{discriminator_forward.6} parent=0 // pred_check
    _
  $region7: #{discriminator_forward.6} parent=0 // pred_check_branch
    %12 = sbr.rel (0) target = $region9
  $region8: #{discriminator_forward.6} parent=0 // pred_region
    _
  $region9: #{discriminator_forward.6} parent=0 // pred_fallthru
    _
  // Predicated region
  $region10: #{discriminator_forward.6} parent=0 // pred_check
    _
  $region11: #{discriminator_forward.6} parent=0 // pred_check_branch
    %14 = sbr.rel (0) target = $region13
  $region12: #{discriminator_forward.6} parent=0 // pred_region
    _
  $region13: #{discriminator_forward.6} parent=0 // pred_fallthru
    _
  // Predicated region
  $region14: #{discriminator_forward.6} parent=0 // pred_check
    _
  $region15: #{discriminator_forward.6} parent=0 // pred_check_branch
    %16 = sbr.rel (0) target = $region17
  $region16: #{discriminator_forward.6} parent=0 // pred_region
    _
  $region17: #{discriminator_forward.6} parent=0 // pred_fallthru
    _
  %v18 = vld [vmem:[%s1] sm:$0xff]
  %v19 = vld [vmem:[%s1 + $0x8] sm:$0xff]
  %v20 = vld [vmem:[%s1 + $0x10] sm:$0xff]
  %v21 = vld [vmem:[%s1 + $0x18] sm:$0xff]
  %v22 = vld [vmem:[%s0] sm:$0xf]
  %v23 = vld [vmem:[%s0 + $0x4] sm:$0xf]
  %v24 = vld [vmem:[%s0 + $0x8] sm:$0xf]
  %v25 = vld [vmem:[%s0 + $0xc] sm:$0xf]
  %v26 = vld [vmem:[%s0 + $0x10] sm:$0xf]
  %v27 = vld [vmem:[%s0 + $0x14] sm:$0xf]
  %v28 = vld [vmem:[%s0 + $0x18] sm:$0xf]
  %v29 = vld [vmem:[%s0 + $0x1c] sm:$0xf]
  %v30 = vld [vmem:[%s0 + $0x20] sm:$0xf]
  %v31 = vld [vmem:[%s0 + $0x24] sm:$0xf]
  %v32 = vld [vmem:[%s0 + $0x28] sm:$0xf]
  %v33 = vld [vmem:[%s0 + $0x2c] sm:$0xf]
  %v34 = vld [vmem:[%s0 + $0x30] sm:$0xf]
  %v35 = vld [vmem:[%s0 + $0x34] sm:$0xf]
  %v36 = vld [vmem:[%s0 + $0x38] sm:$0xf]
  %v37 = vld [vmem:[%s0 + $0x3c] sm:$0xf]
  %v38 = vld [vmem:[%s0 + $0x40] sm:$0xf]
  %v39 = vld [vmem:[%s0 + $0x44] sm:$0xf]
  %v40 = vld [vmem:[%s0 + $0x48] sm:$0xf]
  %v41 = vld [vmem:[%s0 + $0x4c] sm:$0xf]
  %v42 = vld [vmem:[%s0 + $0x50] sm:$0xf]
  %v43 = vld [vmem:[%s0 + $0x54] sm:$0xf]
  %v44 = vld [vmem:[%s0 + $0x58] sm:$0xf]
  %v45 = vld [vmem:[%s0 + $0x5c] sm:$0xf]
  %v46 = vld [vmem:[%s0 + $0x60] sm:$0xf]
  %v47 = vld [vmem:[%s0 + $0x64] sm:$0xf]
  %v48 = vld [vmem:[%s0 + $0x68] sm:$0xf]
  %v49 = vld [vmem:[%s0 + $0x6c] sm:$0xf]
  %v50 = vld [vmem:[%s0 + $0x70] sm:$0xf]
  %v51 = vld [vmem:[%s0 + $0x74] sm:$0xf]
  %v52 = vld [vmem:[%s0 + $0x78] sm:$0xf]
  %v53 = vld [vmem:[%s0 + $0x7c] sm:$0xf]
  %v58 = vunpack.c.l.b16 %v18
  %v59 = vunpack.c.h.b16 %v18
  %v60 = vunpack.c.l.b16 %v19
  %v61 = vunpack.c.h.b16 %v19
  %v62 = vunpack.c.l.b16 %v20
  %v63 = vunpack.c.h.b16 %v20
  %v64 = vunpack.c.l.b16 %v21
  %v65 = vunpack.c.h.b16 %v21
  %v66 = vpack.c.b16 %v60, %v58
  %v67 = vpack.c.b16 %v61, %v59
  %v68 = vpack.c.b16 %v64, %v62
  %v69 = vpack.c.b16 %v65, %v63
  %v106 = vunpack.c.l.b16 %v22
  %v107 = vunpack.c.l.b16 %v23
  %v108 = vunpack.c.l.b16 %v24
  %v109 = vunpack.c.l.b16 %v25
  %v110 = vunpack.c.l.b16 %v26
  %v111 = vunpack.c.l.b16 %v27
  %v112 = vunpack.c.l.b16 %v28
  %v113 = vunpack.c.l.b16 %v29
  %v114 = vunpack.c.l.b16 %v30
  %v115 = vunpack.c.l.b16 %v31
  %v116 = vunpack.c.l.b16 %v32
  %v117 = vunpack.c.l.b16 %v33
  %v118 = vunpack.c.l.b16 %v34
  %v119 = vunpack.c.l.b16 %v35
  %v120 = vunpack.c.l.b16 %v36
  %v121 = vunpack.c.l.b16 %v37
  %v122 = vunpack.c.l.b16 %v38
  %v123 = vunpack.c.l.b16 %v39
  %v124 = vunpack.c.l.b16 %v40
  %v125 = vunpack.c.l.b16 %v41
  %v126 = vunpack.c.l.b16 %v42
  %v127 = vunpack.c.l.b16 %v43
  %v128 = vunpack.c.l.b16 %v44
  %v129 = vunpack.c.l.b16 %v45
  %v130 = vunpack.c.l.b16 %v46
  %v131 = vunpack.c.l.b16 %v47
  %v132 = vunpack.c.l.b16 %v48
  %v133 = vunpack.c.l.b16 %v49
  %v134 = vunpack.c.l.b16 %v50
  %v135 = vunpack.c.l.b16 %v51
  %v136 = vunpack.c.l.b16 %v52
  %v137 = vunpack.c.l.b16 %v53
  %v138 = vpack.c.b16 %v107, %v106
  %v139 = vpack.c.b16 %v109, %v108
  %v140 = vpack.c.b16 %v111, %v110
  %v141 = vpack.c.b16 %v113, %v112
  %v142 = vpack.c.b16 %v115, %v114
  %v143 = vpack.c.b16 %v117, %v116
  %v144 = vpack.c.b16 %v119, %v118
  %v145 = vpack.c.b16 %v121, %v120
  %v146 = vpack.c.b16 %v123, %v122
  %v147 = vpack.c.b16 %v125, %v124
  %v148 = vpack.c.b16 %v127, %v126
  %v149 = vpack.c.b16 %v129, %v128
  %v150 = vpack.c.b16 %v131, %v130
  %v151 = vpack.c.b16 %v133, %v132
  %v152 = vpack.c.b16 %v135, %v134
  %v153 = vpack.c.b16 %v137, %v136
  %170 = vmatprep.subr.bf16.mxu0 0
  %171 = vmatpush1.bf16.msra.mxu0 %v138
  %172 = vmatprep.subr.bf16.mxu0 0
  %173 = vmatpush1.bf16.msra.mxu0 %v139
  %174 = vmatprep.subr.bf16.mxu0 0
  %175 = vmatpush1.bf16.msra.mxu0 %v140
  %176 = vmatprep.subr.bf16.mxu0 0
  %177 = vmatpush1.bf16.msra.mxu0 %v141
  %178 = vmatprep.subr.bf16.mxu0 0
  %179 = vmatpush1.bf16.msra.mxu0 %v142
  %180 = vmatprep.subr.bf16.mxu0 0
  %181 = vmatpush1.bf16.msra.mxu0 %v143
  %182 = vmatprep.subr.bf16.mxu0 0
  %183 = vmatpush1.bf16.msra.mxu0 %v144
  %184 = vmatprep.subr.bf16.mxu0 0
  %185 = vmatpush1.bf16.msra.mxu0 %v145
  %186 = vmatprep.subr.bf16.mxu0 0
  %187 = vmatpush1.bf16.msra.mxu0 %v146
  %188 = vmatprep.subr.bf16.mxu0 0
  %189 = vmatpush1.bf16.msra.mxu0 %v147
  %190 = vmatprep.subr.bf16.mxu0 0
  %191 = vmatpush1.bf16.msra.mxu0 %v148
  %192 = vmatprep.subr.bf16.mxu0 0
  %193 = vmatpush1.bf16.msra.mxu0 %v149
  %194 = vmatprep.subr.bf16.mxu0 0
  %195 = vmatpush1.bf16.msra.mxu0 %v150
  %196 = vmatprep.subr.bf16.mxu0 0
  %197 = vmatpush1.bf16.msra.mxu0 %v151
  %198 = vmatprep.subr.bf16.mxu0 0
  %199 = vmatpush1.bf16.msra.mxu0 %v152
  %200 = vmatprep.subr.bf16.mxu0 0
  %201 = vmatpush1.bf16.msra.mxu0 %v153
  %202 = vmatprep.mubr.bf16.mxu0 %v67
  %203 = vmatmul.mubr.bf16.gmra.mrb[0].mxu0 %v66
  %v204 = vpop.f32.mrb[0].mxu0
  %v205 = vadd.f32 0.0, %v204
  %v206 = vpop.f32.mrb[0].mxu0
  %v207 = vpop.f32.mrb[0].mxu0
  %v208 = vadd.f32 0.0, %v207
  %v209 = vpop.f32.mrb[0].mxu0
  %210 = vmatprep.mubr.bf16.mxu0 %v69
  %211 = vmatmul.mubr.bf16.gmra.mrb[0].mxu0 %v68
  %v212 = vpop.f32.mrb[0].mxu0
  %v213 = vadd.f32 0.0, %v212
  %v214 = vpop.f32.mrb[0].mxu0
  %v215 = vpop.f32.mrb[0].mxu0
  %v216 = vadd.f32 0.0, %v215
  %v217 = vpop.f32.mrb[0].mxu0
  %218 = vdwg.mxu0
  %219 = vadd.xlane.f32.xlu0 %v205
  %v220 = vpop.xlane.xlu0 %219
  %221 = vadd.xlane.f32.xlu0 %v208
  %v222 = vpop.xlane.xlu0 %221
  %223 = vadd.xlane.f32.xlu0 %v213
  %v224 = vpop.xlane.xlu0 %223
  %225 = vadd.xlane.f32.xlu0 %v216
  %v226 = vpop.xlane.xlu0 %225
  %v227 = vrcp.pop 128.0
  %v228 = vmul.f32 %v220, %v227
  %v229 = vmul.f32 %v222, %v227
  %v230 = vmul.f32 %v224, %v227
  %v231 = vmul.f32 %v226, %v227
  %v232 = vsub.f32 %v205, %v228
  %v233 = vsub.f32 %v208, %v229
  %v234 = vsub.f32 %v213, %v230
  %v235 = vsub.f32 %v216, %v231
  %v236 = vmul.f32 %v232, %v232
  %v237 = vmul.f32 %v233, %v233
  %v238 = vmul.f32 %v234, %v234
  %v239 = vmul.f32 %v235, %v235
  %240 = vadd.xlane.f32.xlu0 %v236
  %v241 = vpop.xlane.xlu0 %240
  %242 = vadd.xlane.f32.xlu0 %v237
  %v243 = vpop.xlane.xlu0 %242
  %244 = vadd.xlane.f32.xlu0 %v238
  %v245 = vpop.xlane.xlu0 %244
  %246 = vadd.xlane.f32.xlu0 %v239
  %v247 = vpop.xlane.xlu0 %246
  %v248 = vmul.f32 %v241, %v227
  %v249 = vmul.f32 %v243, %v227
  %v250 = vmul.f32 %v245, %v227
  %v251 = vmul.f32 %v247, %v227
  %v252 = vadd.f32 %v248, 1e-05
  %v253 = vadd.f32 %v249, 1e-05
  %v254 = vadd.f32 %v250, 1e-05
  %v255 = vadd.f32 %v251, 1e-05
  %v256 = vrsqrt.pop %v252
  %v257 = vrsqrt.pop %v253
  %v258 = vrsqrt.pop %v254
  %v259 = vrsqrt.pop %v255
  %v260 = vmul.f32 %v232, %v256
  %v261 = vmul.f32 %v233, %v257
  %v262 = vmul.f32 %v234, %v258
  %v263 = vmul.f32 %v235, %v259
  %v264 = vld [vmem:[%s2] sm:$0xff]
  %v265 = vld [vmem:[%s2 + $0x8] sm:$0xff]
  %v266 = vld [vmem:[%s2 + $0x10] sm:$0xff]
  %v267 = vld [vmem:[%s2 + $0x18] sm:$0xff]
  %269 = vset.pattern.permute.xlu0 0
  %270 = vperm.xlu0 %269, %v264
  %v271 = vpop.permute.xlu0 %270
  %274 = vset.pattern.permute.xlu0 0
  %275 = vperm.xlu0 %274, %v265
  %v276 = vpop.permute.xlu0 %275
  %279 = vset.pattern.permute.xlu0 0
  %280 = vperm.xlu0 %279, %v266
  %v281 = vpop.permute.xlu0 %280
  %284 = vset.pattern.permute.xlu0 0
  %285 = vperm.xlu0 %284, %v267
  %v286 = vpop.permute.xlu0 %285
  %v288 = vmul.f32 %v260, %v271
  %v289 = vmul.f32 %v261, %v276
  %v290 = vmul.f32 %v262, %v281
  %v291 = vmul.f32 %v263, %v286
  %v292 = vld [vmem:[%s3] sm:$0xff]
  %v293 = vld [vmem:[%s3 + $0x8] sm:$0xff]
  %v294 = vld [vmem:[%s3 + $0x10] sm:$0xff]
  %v295 = vld [vmem:[%s3 + $0x18] sm:$0xff]
  %297 = vset.pattern.permute.xlu0 0
  %298 = vperm.xlu0 %297, %v292
  %v299 = vpop.permute.xlu0 %298
  %302 = vset.pattern.permute.xlu0 0
  %303 = vperm.xlu0 %302, %v293
  %v304 = vpop.permute.xlu0 %303
  %307 = vset.pattern.permute.xlu0 0
  %308 = vperm.xlu0 %307, %v294
  %v309 = vpop.permute.xlu0 %308
  %312 = vset.pattern.permute.xlu0 0
  %313 = vperm.xlu0 %312, %v295
  %v314 = vpop.permute.xlu0 %313
  %v316 = vadd.f32 %v288, %v299
  %v317 = vadd.f32 %v289, %v304
  %v318 = vadd.f32 %v290, %v309
  %v319 = vadd.f32 %v291, %v314
  %vm320 = vcmp.ge.f32.partialorder %v316, 0.0
  %vm321 = vcmp.ge.f32.partialorder %v317, 0.0
  %vm322 = vcmp.ge.f32.partialorder %v318, 0.0
  %vm323 = vcmp.ge.f32.partialorder %v319, 0.0
  %v324 = vmul.f32 %v316, 0.2
  %v325 = vmul.f32 %v317, 0.2
  %v326 = vmul.f32 %v318, 0.2
  %v327 = vmul.f32 %v319, 0.2
  %v328 = vsel %vm320, %v316, %v324
  %v329 = vsel %vm321, %v317, %v325
  %v330 = vsel %vm322, %v318, %v326
  %v331 = vsel %vm323, %v319, %v327
  %v332 = vpack.c.bf16 %v329, %v328
  %v333 = vpack.c.bf16 %v331, %v330
  %v336 = vunpack.c.l.b16 %v332
  %v337 = vunpack.c.h.b16 %v332
  %v338 = vunpack.c.l.b16 %v333
  %v339 = vunpack.c.h.b16 %v333
  %v340 = vpack.c.b16 %v336, %v336
  %v341 = vpack.c.b16 %v337, %v337
  %v342 = vpack.c.b16 %v338, %v338
  %v343 = vpack.c.b16 %v339, %v339
  %348 = vst [vmem:[%s4] sm:$0xf] %v340
  %349 = vst [vmem:[%s4 + $0x4] sm:$0xf] %v341
  %350 = vst [vmem:[%s4 + $0x8] sm:$0xf] %v342
  %351 = vst [vmem:[%s4 + $0xc] sm:$0xf] %v343
  // Predicated region
  $region18: #{discriminator_forward.6} parent=0 // pred_check
    _
  $region19: #{discriminator_forward.6} parent=0 // pred_check_branch
    %353 = sbr.rel (0) target = $region21
  $region20: #{discriminator_forward.6} parent=0 // pred_region
    _
  $region21: #{discriminator_forward.6} parent=0 // pred_fallthru
    _
  // Predicated region
  $region22: #{discriminator_forward.6} parent=0 // pred_check
    _
  $region23: #{discriminator_forward.6} parent=0 // pred_check_branch
    %355 = sbr.rel (0) target = $region25
  $region24: #{discriminator_forward.6} parent=0 // pred_region
    _
  $region25: #{discriminator_forward.6} parent=0 // pred_fallthru
    _

// kernel: discriminator_forward.7
$region0: #{discriminator_forward.7}
  #allocation0 [shape = 'u32[]', space=smem, size = 0x4, offset = 0x4, fixed_abs, tag = 'smem constant byte address 0x4 - core index']
  #allocation1 [shape = 'u32[144,128]{1,0:T(1,128)}', space=vmem, size = 0x12000, scoped, tag = 'internal scratch']
  %s0 = inlined_call_operand.vmem [shape: bf16[512,32], index: 0, kind: input, shape index: {}]
  %s1 = inlined_call_operand.vmem [shape: bf16[64,512], index: 1, kind: input, shape index: {}]
  %s2 = inlined_call_operand.vmem [shape: f32[64,1], index: 2, kind: input, shape index: {}]
  %s3 = inlined_call_operand.vmem [shape: f32[64,1], index: 3, kind: input, shape index: {}]
  %s4 = inlined_call_operand.vmem [shape: f32[64,32], index: 4, kind: input, shape index: {}]
  %s5 = inlined_call_operand.vmem [shape: f32[32,2], index: 5, kind: input, shape index: {}]
  %s6 = inlined_call_operand.hbm [shape: f32[1,2], index: 6, kind: output, shape index: {}]
  %s7 = sld [smem:[#allocation0]]
  $region34: #{discriminator_forward.7} parent=0
    _
  %s9 = ssub.s32 1, %s7
  %s10 = scalar_select 0, %s9, %s7
  $region1: #{discriminator_forward.7} parent=0
    #allocation2 [shape = 'u8[512]{0}', space=vmem, size = 0x400, scoped, tag = 'output window, operand 0, single buffered']
    #allocation3 [shape = 's32[1]{0}', space=sflag, size = 0x4, scoped, tag = 'scoped memory for discriminator_forward.7']
    %11 = vsyncpa [#allocation3], 0
    // Predicated region
    $region2: #{discriminator_forward.7} parent=1 // pred_check
      _
    $region3: #{discriminator_forward.7} parent=1 // pred_check_branch
      %13 = sbr.rel (0) target = $region5
    $region4: #{discriminator_forward.7} parent=1 // pred_region
      _
    $region5: #{discriminator_forward.7} parent=1 // pred_fallthru
      _
    // Predicated region
    $region6: #{discriminator_forward.7} parent=1 // pred_check
      _
    $region7: #{discriminator_forward.7} parent=1 // pred_check_branch
      %15 = sbr.rel (0) target = $region9
    $region8: #{discriminator_forward.7} parent=1 // pred_region
      _
    $region9: #{discriminator_forward.7} parent=1 // pred_fallthru
      _
    // Predicated region
    $region10: #{discriminator_forward.7} parent=1 // pred_check
      _
    $region11: #{discriminator_forward.7} parent=1 // pred_check_branch
      %17 = sbr.rel (0) target = $region13
    $region12: #{discriminator_forward.7} parent=1 // pred_region
      _
    $region13: #{discriminator_forward.7} parent=1 // pred_fallthru
      _
    // Predicated region
    $region14: #{discriminator_forward.7} parent=1 // pred_check
      _
    $region15: #{discriminator_forward.7} parent=1 // pred_check_branch
      %19 = sbr.rel (0) target = $region17
    $region16: #{discriminator_forward.7} parent=1 // pred_region
      _
    $region17: #{discriminator_forward.7} parent=1 // pred_fallthru
      _
    // Predicated region
    $region18: #{discriminator_forward.7} parent=1 // pred_check
      _
    $region19: #{discriminator_forward.7} parent=1 // pred_check_branch
      %21 = sbr.rel (0) target = $region21
    $region20: #{discriminator_forward.7} parent=1 // pred_region
      _
    $region21: #{discriminator_forward.7} parent=1 // pred_fallthru
      _
    // Predicated region
    $region22: #{discriminator_forward.7} parent=1 // pred_check
      _
    $region23: #{discriminator_forward.7} parent=1 // pred_check_branch
      %23 = sbr.rel (0) target = $region25
    $region24: #{discriminator_forward.7} parent=1 // pred_region
      _
    $region25: #{discriminator_forward.7} parent=1 // pred_fallthru
      _
    %v25 = vld [vmem:[%s1] sm:$0xff]
    %v26 = vld [vmem:[%s1 + $0x8] sm:$0xff]
    %v27 = vld [vmem:[%s1 + $0x10] sm:$0xff]
    %v28 = vld [vmem:[%s1 + $0x18] sm:$0xff]
    %v29 = vld [vmem:[%s1 + $0x20] sm:$0xff]
    %v30 = vld [vmem:[%s1 + $0x28] sm:$0xff]
    %v31 = vld [vmem:[%s1 + $0x30] sm:$0xff]
    %v32 = vld [vmem:[%s1 + $0x38] sm:$0xff]
    %v33 = vld [vmem:[%s1 + $0x40] sm:$0xff]
    %v34 = vld [vmem:[%s1 + $0x48] sm:$0xff]
    %v35 = vld [vmem:[%s1 + $0x50] sm:$0xff]
    %v36 = vld [vmem:[%s1 + $0x58] sm:$0xff]
    %v37 = vld [vmem:[%s1 + $0x60] sm:$0xff]
    %v38 = vld [vmem:[%s1 + $0x68] sm:$0xff]
    %v39 = vld [vmem:[%s1 + $0x70] sm:$0xff]
    %v40 = vld [vmem:[%s1 + $0x78] sm:$0xff]
    %v41 = vld [vmem:[%s0] sm:$0xf]
    %v42 = vld [vmem:[%s0 + $0x4] sm:$0xf]
    %v43 = vld [vmem:[%s0 + $0x8] sm:$0xf]
    %v44 = vld [vmem:[%s0 + $0xc] sm:$0xf]
    %v45 = vld [vmem:[%s0 + $0x10] sm:$0xf]
    %v46 = vld [vmem:[%s0 + $0x14] sm:$0xf]
    %v47 = vld [vmem:[%s0 + $0x18] sm:$0xf]
    %v48 = vld [vmem:[%s0 + $0x1c] sm:$0xf]
    %v49 = vld [vmem:[%s0 + $0x20] sm:$0xf]
    %v50 = vld [vmem:[%s0 + $0x24] sm:$0xf]
    %v51 = vld [vmem:[%s0 + $0x28] sm:$0xf]
    %v52 = vld [vmem:[%s0 + $0x2c] sm:$0xf]
    %v53 = vld [vmem:[%s0 + $0x30] sm:$0xf]
    %v54 = vld [vmem:[%s0 + $0x34] sm:$0xf]
    %v55 = vld [vmem:[%s0 + $0x38] sm:$0xf]
    %v56 = vld [vmem:[%s0 + $0x3c] sm:$0xf]
    %v57 = vld [vmem:[%s0 + $0x40] sm:$0xf]
    %v58 = vld [vmem:[%s0 + $0x44] sm:$0xf]
    %v59 = vld [vmem:[%s0 + $0x48] sm:$0xf]
    %v60 = vld [vmem:[%s0 + $0x4c] sm:$0xf]
    %v61 = vld [vmem:[%s0 + $0x50] sm:$0xf]
    %v62 = vld [vmem:[%s0 + $0x54] sm:$0xf]
    %v63 = vld [vmem:[%s0 + $0x58] sm:$0xf]
    %v64 = vld [vmem:[%s0 + $0x5c] sm:$0xf]
    %v65 = vld [vmem:[%s0 + $0x60] sm:$0xf]
    %v66 = vld [vmem:[%s0 + $0x64] sm:$0xf]
    %v67 = vld [vmem:[%s0 + $0x68] sm:$0xf]
    %v68 = vld [vmem:[%s0 + $0x6c] sm:$0xf]
    %v69 = vld [vmem:[%s0 + $0x70] sm:$0xf]
    %v70 = vld [vmem:[%s0 + $0x74] sm:$0xf]
    %v71 = vld [vmem:[%s0 + $0x78] sm:$0xf]
    %v72 = vld [vmem:[%s0 + $0x7c] sm:$0xf]
    %v73 = vld [vmem:[%s0 + $0x80] sm:$0xf]
    %v74 = vld [vmem:[%s0 + $0x84] sm:$0xf]
    %v75 = vld [vmem:[%s0 + $0x88] sm:$0xf]
    %v76 = vld [vmem:[%s0 + $0x8c] sm:$0xf]
    %v77 = vld [vmem:[%s0 + $0x90] sm:$0xf]
    %v78 = vld [vmem:[%s0 + $0x94] sm:$0xf]
    %v79 = vld [vmem:[%s0 + $0x98] sm:$0xf]
    %v80 = vld [vmem:[%s0 + $0x9c] sm:$0xf]
    %v81 = vld [vmem:[%s0 + $0xa0] sm:$0xf]
    %v82 = vld [vmem:[%s0 + $0xa4] sm:$0xf]
    %v83 = vld [vmem:[%s0 + $0xa8] sm:$0xf]
    %v84 = vld [vmem:[%s0 + $0xac] sm:$0xf]
    %v85 = vld [vmem:[%s0 + $0xb0] sm:$0xf]
    %v86 = vld [vmem:[%s0 + $0xb4] sm:$0xf]
    %v87 = vld [vmem:[%s0 + $0xb8] sm:$0xf]
    %v88 = vld [vmem:[%s0 + $0xbc] sm:$0xf]
    %v89 = vld [vmem:[%s0 + $0xc0] sm:$0xf]
    %v90 = vld [vmem:[%s0 + $0xc4] sm:$0xf]
    %v91 = vld [vmem:[%s0 + $0xc8] sm:$0xf]
    %v92 = vld [vmem:[%s0 + $0xcc] sm:$0xf]
    %v93 = vld [vmem:[%s0 + $0xd0] sm:$0xf]
    %v94 = vld [vmem:[%s0 + $0xd4] sm:$0xf]
    %v95 = vld [vmem:[%s0 + $0xd8] sm:$0xf]
    %v96 = vld [vmem:[%s0 + $0xdc] sm:$0xf]
    %v97 = vld [vmem:[%s0 + $0xe0] sm:$0xf]
    %v98 = vld [vmem:[%s0 + $0xe4] sm:$0xf]
    %v99 = vld [vmem:[%s0 + $0xe8] sm:$0xf]
    %v100 = vld [vmem:[%s0 + $0xec] sm:$0xf]
    %v101 = vld [vmem:[%s0 + $0xf0] sm:$0xf]
    %v102 = vld [vmem:[%s0 + $0xf4] sm:$0xf]
    %v103 = vld [vmem:[%s0 + $0xf8] sm:$0xf]
    %v104 = vld [vmem:[%s0 + $0xfc] sm:$0xf]
    %v121 = vunpack.c.l.b16 %v25
    %v122 = vunpack.c.h.b16 %v25
    %v123 = vunpack.c.l.b16 %v26
    %v124 = vunpack.c.h.b16 %v26
    %v125 = vunpack.c.l.b16 %v27
    %v126 = vunpack.c.h.b16 %v27
    %v127 = vunpack.c.l.b16 %v28
    %v128 = vunpack.c.h.b16 %v28
    %v129 = vunpack.c.l.b16 %v29
    %v130 = vunpack.c.h.b16 %v29
    %v131 = vunpack.c.l.b16 %v30
    %v132 = vunpack.c.h.b16 %v30
    %v133 = vunpack.c.l.b16 %v31
    %v134 = vunpack.c.h.b16 %v31
    %v135 = vunpack.c.l.b16 %v32
    %v136 = vunpack.c.h.b16 %v32
    %v137 = vunpack.c.l.b16 %v33
    %v138 = vunpack.c.h.b16 %v33
    %v139 = vunpack.c.l.b16 %v34
    %v140 = vunpack.c.h.b16 %v34
    %v141 = vunpack.c.l.b16 %v35
    %v142 = vunpack.c.h.b16 %v35
    %v143 = vunpack.c.l.b16 %v36
    %v144 = vunpack.c.h.b16 %v36
    %v145 = vunpack.c.l.b16 %v37
    %v146 = vunpack.c.h.b16 %v37
    %v147 = vunpack.c.l.b16 %v38
    %v148 = vunpack.c.h.b16 %v38
    %v149 = vunpack.c.l.b16 %v39
    %v150 = vunpack.c.h.b16 %v39
    %v151 = vunpack.c.l.b16 %v40
    %v152 = vunpack.c.h.b16 %v40
    %v153 = vpack.c.b16 %v125, %v121
    %v154 = vpack.c.b16 %v126, %v122
    %v155 = vpack.c.b16 %v127, %v123
    %v156 = vpack.c.b16 %v128, %v124
    %v157 = vpack.c.b16 %v133, %v129
    %v158 = vpack.c.b16 %v134, %v130
    %v159 = vpack.c.b16 %v135, %v131
    %v160 = vpack.c.b16 %v136, %v132
    %v161 = vpack.c.b16 %v141, %v137
    %v162 = vpack.c.b16 %v142, %v138
    %v163 = vpack.c.b16 %v143, %v139
    %v164 = vpack.c.b16 %v144, %v140
    %v165 = vpack.c.b16 %v149, %v145
    %v166 = vpack.c.b16 %v150, %v146
    %v167 = vpack.c.b16 %v151, %v147
    %v168 = vpack.c.b16 %v152, %v148
    %v249 = vunpack.c.l.b16 %v41
    %v250 = vunpack.c.l.b16 %v42
    %v251 = vunpack.c.l.b16 %v43
    %v252 = vunpack.c.l.b16 %v44
    %v253 = vunpack.c.l.b16 %v45
    %v254 = vunpack.c.l.b16 %v46
    %v255 = vunpack.c.l.b16 %v47
    %v256 = vunpack.c.l.b16 %v48
    %v257 = vunpack.c.l.b16 %v49
    %v258 = vunpack.c.l.b16 %v50
    %v259 = vunpack.c.l.b16 %v51
    %v260 = vunpack.c.l.b16 %v52
    %v261 = vunpack.c.l.b16 %v53
    %v262 = vunpack.c.l.b16 %v54
    %v263 = vunpack.c.l.b16 %v55
    %v264 = vunpack.c.l.b16 %v56
    %v265 = vunpack.c.l.b16 %v57
    %v266 = vunpack.c.l.b16 %v58
    %v267 = vunpack.c.l.b16 %v59
    %v268 = vunpack.c.l.b16 %v60
    %v269 = vunpack.c.l.b16 %v61
    %v270 = vunpack.c.l.b16 %v62
    %v271 = vunpack.c.l.b16 %v63
    %v272 = vunpack.c.l.b16 %v64
    %v273 = vunpack.c.l.b16 %v65
    %v274 = vunpack.c.l.b16 %v66
    %v275 = vunpack.c.l.b16 %v67
    %v276 = vunpack.c.l.b16 %v68
    %v277 = vunpack.c.l.b16 %v69
    %v278 = vunpack.c.l.b16 %v70
    %v279 = vunpack.c.l.b16 %v71
    %v280 = vunpack.c.l.b16 %v72
    %v281 = vunpack.c.l.b16 %v73
    %v282 = vunpack.c.l.b16 %v74
    %v283 = vunpack.c.l.b16 %v75
    %v284 = vunpack.c.l.b16 %v76
    %v285 = vunpack.c.l.b16 %v77
    %v286 = vunpack.c.l.b16 %v78
    %v287 = vunpack.c.l.b16 %v79
    %v288 = vunpack.c.l.b16 %v80
    %v289 = vunpack.c.l.b16 %v81
    %v290 = vunpack.c.l.b16 %v82
    %v291 = vunpack.c.l.b16 %v83
    %v292 = vunpack.c.l.b16 %v84
    %v293 = vunpack.c.l.b16 %v85
    %v294 = vunpack.c.l.b16 %v86
    %v295 = vunpack.c.l.b16 %v87
    %v296 = vunpack.c.l.b16 %v88
    %v297 = vunpack.c.l.b16 %v89
    %v298 = vunpack.c.l.b16 %v90
    %v299 = vunpack.c.l.b16 %v91
    %v300 = vunpack.c.l.b16 %v92
    %v301 = vunpack.c.l.b16 %v93
    %v302 = vunpack.c.l.b16 %v94
    %v303 = vunpack.c.l.b16 %v95
    %v304 = vunpack.c.l.b16 %v96
    %v305 = vunpack.c.l.b16 %v97
    %v306 = vunpack.c.l.b16 %v98
    %v307 = vunpack.c.l.b16 %v99
    %v308 = vunpack.c.l.b16 %v100
    %v309 = vunpack.c.l.b16 %v101
    %v310 = vunpack.c.l.b16 %v102
    %v311 = vunpack.c.l.b16 %v103
    %v312 = vunpack.c.l.b16 %v104
    %v313 = vpack.c.b16 %v250, %v249
    %v314 = vpack.c.b16 %v252, %v251
    %v315 = vpack.c.b16 %v254, %v253
    %v316 = vpack.c.b16 %v256, %v255
    %v317 = vpack.c.b16 %v258, %v257
    %v318 = vpack.c.b16 %v260, %v259
    %v319 = vpack.c.b16 %v262, %v261
    %v320 = vpack.c.b16 %v264, %v263
    %v321 = vpack.c.b16 %v266, %v265
    %v322 = vpack.c.b16 %v268, %v267
    %v323 = vpack.c.b16 %v270, %v269
    %v324 = vpack.c.b16 %v272, %v271
    %v325 = vpack.c.b16 %v274, %v273
    %v326 = vpack.c.b16 %v276, %v275
    %v327 = vpack.c.b16 %v278, %v277
    %v328 = vpack.c.b16 %v280, %v279
    %v329 = vpack.c.b16 %v282, %v281
    %v330 = vpack.c.b16 %v284, %v283
    %v331 = vpack.c.b16 %v286, %v285
    %v332 = vpack.c.b16 %v288, %v287
    %v333 = vpack.c.b16 %v290, %v289
    %v334 = vpack.c.b16 %v292, %v291
    %v335 = vpack.c.b16 %v294, %v293
    %v336 = vpack.c.b16 %v296, %v295
    %v337 = vpack.c.b16 %v298, %v297
    %v338 = vpack.c.b16 %v300, %v299
    %v339 = vpack.c.b16 %v302, %v301
    %v340 = vpack.c.b16 %v304, %v303
    %v341 = vpack.c.b16 %v306, %v305
    %v342 = vpack.c.b16 %v308, %v307
    %v343 = vpack.c.b16 %v310, %v309
    %v344 = vpack.c.b16 %v312, %v311
    %377 = vmatprep.subr.bf16.mxu0 0
    %378 = vmatpush1.bf16.msra.mxu0 %v313
    %379 = vmatprep.subr.bf16.mxu0 0
    %380 = vmatpush1.bf16.msra.mxu0 %v314
    %381 = vmatprep.subr.bf16.mxu0 0
    %382 = vmatpush1.bf16.msra.mxu0 %v315
    %383 = vmatprep.subr.bf16.mxu0 0
    %384 = vmatpush1.bf16.msra.mxu0 %v316
    %385 = vmatprep.subr.bf16.mxu0 0
    %386 = vmatpush1.bf16.msra.mxu0 %v317
    %387 = vmatprep.subr.bf16.mxu0 0
    %388 = vmatpush1.bf16.msra.mxu0 %v318
    %389 = vmatprep.subr.bf16.mxu0 0
    %390 = vmatpush1.bf16.msra.mxu0 %v319
    %391 = vmatprep.subr.bf16.mxu0 0
    %392 = vmatpush1.bf16.msra.mxu0 %v320
    %393 = vmatprep.subr.bf16.mxu0 0
    %394 = vmatpush1.bf16.msra.mxu0 %v321
    %395 = vmatprep.subr.bf16.mxu0 0
    %396 = vmatpush1.bf16.msra.mxu0 %v322
    %397 = vmatprep.subr.bf16.mxu0 0
    %398 = vmatpush1.bf16.msra.mxu0 %v323
    %399 = vmatprep.subr.bf16.mxu0 0
    %400 = vmatpush1.bf16.msra.mxu0 %v324
    %401 = vmatprep.subr.bf16.mxu0 0
    %402 = vmatpush1.bf16.msra.mxu0 %v325
    %403 = vmatprep.subr.bf16.mxu0 0
    %404 = vmatpush1.bf16.msra.mxu0 %v326
    %405 = vmatprep.subr.bf16.mxu0 0
    %406 = vmatpush1.bf16.msra.mxu0 %v327
    %407 = vmatprep.subr.bf16.mxu0 0
    %408 = vmatpush1.bf16.msra.mxu0 %v328
    %409 = vmatprep.mubr.bf16.mxu0 %v154
    %410 = vmatmul.mubr.bf16.gmra.mrb[0].mxu0 %v153
    %v411 = vpop.f32.mrb[0].mxu0
    %v412 = vadd.f32 0.0, %v411
    %v413 = vpop.f32.mrb[0].mxu0
    %v414 = vpop.f32.mrb[0].mxu0
    %v415 = vadd.f32 0.0, %v414
    %v416 = vpop.f32.mrb[0].mxu0
    %417 = vmatprep.mubr.bf16.mxu0 %v158
    %418 = vmatmul.mubr.bf16.gmra.mrb[0].mxu0 %v157
    %v419 = vpop.f32.mrb[0].mxu0
    %v420 = vadd.f32 0.0, %v419
    %v421 = vpop.f32.mrb[0].mxu0
    %v422 = vpop.f32.mrb[0].mxu0
    %v423 = vadd.f32 0.0, %v422
    %v424 = vpop.f32.mrb[0].mxu0
    %425 = vmatprep.mubr.bf16.mxu0 %v162
    %426 = vmatmul.mubr.bf16.gmra.mrb[0].mxu0 %v161
    %v427 = vpop.f32.mrb[0].mxu0
    %v428 = vadd.f32 0.0, %v427
    %v429 = vpop.f32.mrb[0].mxu0
    %v430 = vpop.f32.mrb[0].mxu0
    %v431 = vadd.f32 0.0, %v430
    %v432 = vpop.f32.mrb[0].mxu0
    %433 = vmatprep.mubr.bf16.mxu0 %v166
    %434 = vmatmul.mubr.bf16.gmra.mrb[0].mxu0 %v165
    %v435 = vpop.f32.mrb[0].mxu0
    %v436 = vadd.f32 0.0, %v435
    %v437 = vpop.f32.mrb[0].mxu0
    %v438 = vpop.f32.mrb[0].mxu0
    %v439 = vadd.f32 0.0, %v438
    %v440 = vpop.f32.mrb[0].mxu0
    %441 = vdwg.mxu0
    %442 = vmatprep.subr.bf16.mxu0 0
    %443 = vmatpush1.bf16.msra.mxu0 %v329
    %444 = vmatprep.subr.bf16.mxu0 0
    %445 = vmatpush1.bf16.msra.mxu0 %v330
    %446 = vmatprep.subr.bf16.mxu0 0
    %447 = vmatpush1.bf16.msra.mxu0 %v331
    %448 = vmatprep.subr.bf16.mxu0 0
    %449 = vmatpush1.bf16.msra.mxu0 %v332
    %450 = vmatprep.subr.bf16.mxu0 0
    %451 = vmatpush1.bf16.msra.mxu0 %v333
    %452 = vmatprep.subr.bf16.mxu0 0
    %453 = vmatpush1.bf16.msra.mxu0 %v334
    %454 = vmatprep.subr.bf16.mxu0 0
    %455 = vmatpush1.bf16.msra.mxu0 %v335
    %456 = vmatprep.subr.bf16.mxu0 0
    %457 = vmatpush1.bf16.msra.mxu0 %v336
    %458 = vmatprep.subr.bf16.mxu0 0
    %459 = vmatpush1.bf16.msra.mxu0 %v337
    %460 = vmatprep.subr.bf16.mxu0 0
    %461 = vmatpush1.bf16.msra.mxu0 %v338
    %462 = vmatprep.subr.bf16.mxu0 0
    %463 = vmatpush1.bf16.msra.mxu0 %v339
    %464 = vmatprep.subr.bf16.mxu0 0
    %465 = vmatpush1.bf16.msra.mxu0 %v340
    %466 = vmatprep.subr.bf16.mxu0 0
    %467 = vmatpush1.bf16.msra.mxu0 %v341
    %468 = vmatprep.subr.bf16.mxu0 0
    %469 = vmatpush1.bf16.msra.mxu0 %v342
    %470 = vmatprep.subr.bf16.mxu0 0
    %471 = vmatpush1.bf16.msra.mxu0 %v343
    %472 = vmatprep.subr.bf16.mxu0 0
    %473 = vmatpush1.bf16.msra.mxu0 %v344
    %474 = vmatprep.mubr.bf16.mxu0 %v156
    %475 = vmatmul.mubr.bf16.gmra.mrb[0].mxu0 %v155
    %v476 = vpop.f32.mrb[0].mxu0
    %v477 = vadd.f32 %v412, %v476
    %v478 = vpop.f32.mrb[0].mxu0
    %v479 = vpop.f32.mrb[0].mxu0
    %v480 = vadd.f32 %v415, %v479
    %v481 = vpop.f32.mrb[0].mxu0
    %482 = vmatprep.mubr.bf16.mxu0 %v160
    %483 = vmatmul.mubr.bf16.gmra.mrb[0].mxu0 %v159
    %v484 = vpop.f32.mrb[0].mxu0
    %v485 = vadd.f32 %v420, %v484
    %v486 = vpop.f32.mrb[0].mxu0
    %v487 = vpop.f32.mrb[0].mxu0
    %v488 = vadd.f32 %v423, %v487
    %v489 = vpop.f32.mrb[0].mxu0
    %490 = vmatprep.mubr.bf16.mxu0 %v164
    %491 = vmatmul.mubr.bf16.gmra.mrb[0].mxu0 %v163
    %v492 = vpop.f32.mrb[0].mxu0
    %v493 = vadd.f32 %v428, %v492
    %v494 = vpop.f32.mrb[0].mxu0
    %v495 = vpop.f32.mrb[0].mxu0
    %v496 = vadd.f32 %v431, %v495
    %v497 = vpop.f32.mrb[0].mxu0
    %498 = vmatprep.mubr.bf16.mxu0 %v168
    %499 = vmatmul.mubr.bf16.gmra.mrb[0].mxu0 %v167
    %v500 = vpop.f32.mrb[0].mxu0
    %v501 = vadd.f32 %v436, %v500
    %v502 = vpop.f32.mrb[0].mxu0
    %v503 = vpop.f32.mrb[0].mxu0
    %v504 = vadd.f32 %v439, %v503
    %v505 = vpop.f32.mrb[0].mxu0
    %506 = vdwg.mxu0
    %vm507 = vcmask 261120
    %v508 = vsel %vm507, %v477, 0.0
    %509 = vadd.xlane.f32.xlu0 %v508
    %v510 = vpop.xlane.xlu0 %509
    %v511 = vsel %vm507, %v480, 0.0
    %512 = vadd.xlane.f32.xlu0 %v511
    %v513 = vpop.xlane.xlu0 %512
    %v514 = vsel %vm507, %v485, 0.0
    %515 = vadd.xlane.f32.xlu0 %v514
    %v516 = vpop.xlane.xlu0 %515
    %v517 = vsel %vm507, %v488, 0.0
    %518 = vadd.xlane.f32.xlu0 %v517
    %v519 = vpop.xlane.xlu0 %518
    %v520 = vsel %vm507, %v493, 0.0
    %521 = vadd.xlane.f32.xlu0 %v520
    %v522 = vpop.xlane.xlu0 %521
    %v523 = vsel %vm507, %v496, 0.0
    %524 = vadd.xlane.f32.xlu0 %v523
    %v525 = vpop.xlane.xlu0 %524
    %v526 = vsel %vm507, %v501, 0.0
    %527 = vadd.xlane.f32.xlu0 %v526
    %v528 = vpop.xlane.xlu0 %527
    %v529 = vsel %vm507, %v504, 0.0
    %530 = vadd.xlane.f32.xlu0 %v529
    %v531 = vpop.xlane.xlu0 %530
    %v532 = vrcp.pop 32.0
    %v533 = vmul.f32 %v510, %v532
    %v534 = vmul.f32 %v513, %v532
    %v535 = vmul.f32 %v516, %v532
    %v536 = vmul.f32 %v519, %v532
    %v537 = vmul.f32 %v522, %v532
    %v538 = vmul.f32 %v525, %v532
    %v539 = vmul.f32 %v528, %v532
    %v540 = vmul.f32 %v531, %v532
    %v541 = vsub.f32 %v477, %v533
    %v542 = vsub.f32 %v480, %v534
    %v543 = vsub.f32 %v485, %v535
    %v544 = vsub.f32 %v488, %v536
    %v545 = vsub.f32 %v493, %v537
    %v546 = vsub.f32 %v496, %v538
    %v547 = vsub.f32 %v501, %v539
    %v548 = vsub.f32 %v504, %v540
    %v549 = vmul.f32 %v541, %v541
    %v550 = vmul.f32 %v542, %v542
    %v551 = vmul.f32 %v543, %v543
    %v552 = vmul.f32 %v544, %v544
    %v553 = vmul.f32 %v545, %v545
    %v554 = vmul.f32 %v546, %v546
    %v555 = vmul.f32 %v547, %v547
    %v556 = vmul.f32 %v548, %v548
    %v557 = vsel %vm507, %v549, 0.0
    %558 = vadd.xlane.f32.xlu0 %v557
    %v559 = vpop.xlane.xlu0 %558
    %v560 = vsel %vm507, %v550, 0.0
    %561 = vadd.xlane.f32.xlu0 %v560
    %v562 = vpop.xlane.xlu0 %561
    %v563 = vsel %vm507, %v551, 0.0
    %564 = vadd.xlane.f32.xlu0 %v563
    %v565 = vpop.xlane.xlu0 %564
    %v566 = vsel %vm507, %v552, 0.0
    %567 = vadd.xlane.f32.xlu0 %v566
    %v568 = vpop.xlane.xlu0 %567
    %v569 = vsel %vm507, %v553, 0.0
    %570 = vadd.xlane.f32.xlu0 %v569
    %v571 = vpop.xlane.xlu0 %570
    %v572 = vsel %vm507, %v554, 0.0
    %573 = vadd.xlane.f32.xlu0 %v572
    %v574 = vpop.xlane.xlu0 %573
    %v575 = vsel %vm507, %v555, 0.0
    %576 = vadd.xlane.f32.xlu0 %v575
    %v577 = vpop.xlane.xlu0 %576
    %v578 = vsel %vm507, %v556, 0.0
    %579 = vadd.xlane.f32.xlu0 %v578
    %v580 = vpop.xlane.xlu0 %579
    %v581 = vmul.f32 %v559, %v532
    %v582 = vmul.f32 %v562, %v532
    %v583 = vmul.f32 %v565, %v532
    %v584 = vmul.f32 %v568, %v532
    %v585 = vmul.f32 %v571, %v532
    %v586 = vmul.f32 %v574, %v532
    %v587 = vmul.f32 %v577, %v532
    %v588 = vmul.f32 %v580, %v532
    %v589 = vadd.f32 %v581, 1e-05
    %v590 = vadd.f32 %v582, 1e-05
    %v591 = vadd.f32 %v583, 1e-05
    %v592 = vadd.f32 %v584, 1e-05
    %v593 = vadd.f32 %v585, 1e-05
    %v594 = vadd.f32 %v586, 1e-05
    %v595 = vadd.f32 %v587, 1e-05
    %v596 = vadd.f32 %v588, 1e-05
    %v597 = vrsqrt.pop %v589
    %v598 = vrsqrt.pop %v590
    %v599 = vrsqrt.pop %v591
    %v600 = vrsqrt.pop %v592
    %v601 = vrsqrt.pop %v593
    %v602 = vrsqrt.pop %v594
    %v603 = vrsqrt.pop %v595
    %v604 = vrsqrt.pop %v596
    %v605 = vmul.f32 %v541, %v597
    %v606 = vmul.f32 %v542, %v598
    %v607 = vmul.f32 %v543, %v599
    %v608 = vmul.f32 %v544, %v600
    %v609 = vmul.f32 %v545, %v601
    %v610 = vmul.f32 %v546, %v602
    %v611 = vmul.f32 %v547, %v603
    %v612 = vmul.f32 %v548, %v604
    %v613 = vld [vmem:[%s2] sm:$0xff]
    %v614 = vld [vmem:[%s2 + $0x8] sm:$0xff]
    %v615 = vld [vmem:[%s2 + $0x10] sm:$0xff]
    %v616 = vld [vmem:[%s2 + $0x18] sm:$0xff]
    %v617 = vld [vmem:[%s2 + $0x20] sm:$0xff]
    %v618 = vld [vmem:[%s2 + $0x28] sm:$0xff]
    %v619 = vld [vmem:[%s2 + $0x30] sm:$0xff]
    %v620 = vld [vmem:[%s2 + $0x38] sm:$0xff]
    %622 = vset.pattern.permute.xlu0 0
    %623 = vperm.xlu0 %622, %v613
    %v624 = vpop.permute.xlu0 %623
    %627 = vset.pattern.permute.xlu0 0
    %628 = vperm.xlu0 %627, %v614
    %v629 = vpop.permute.xlu0 %628
    %632 = vset.pattern.permute.xlu0 0
    %633 = vperm.xlu0 %632, %v615
    %v634 = vpop.permute.xlu0 %633
    %637 = vset.pattern.permute.xlu0 0
    %638 = vperm.xlu0 %637, %v616
    %v639 = vpop.permute.xlu0 %638
    %642 = vset.pattern.permute.xlu0 0
    %643 = vperm.xlu0 %642, %v617
    %v644 = vpop.permute.xlu0 %643
    %647 = vset.pattern.permute.xlu0 0
    %648 = vperm.xlu0 %647, %v618
    %v649 = vpop.permute.xlu0 %648
    %652 = vset.pattern.permute.xlu0 0
    %653 = vperm.xlu0 %652, %v619
    %v654 = vpop.permute.xlu0 %653
    %657 = vset.pattern.permute.xlu0 0
    %658 = vperm.xlu0 %657, %v620
    %v659 = vpop.permute.xlu0 %658
    %v661 = vmul.f32 %v605, %v624
    %v662 = vmul.f32 %v606, %v629
    %v663 = vmul.f32 %v607, %v634
    %v664 = vmul.f32 %v608, %v639
    %v665 = vmul.f32 %v609, %v644
    %v666 = vmul.f32 %v610, %v649
    %v667 = vmul.f32 %v611, %v654
    %v668 = vmul.f32 %v612, %v659
    %v669 = vld [vmem:[%s3] sm:$0xff]
    %v670 = vld [vmem:[%s3 + $0x8] sm:$0xff]
    %v671 = vld [vmem:[%s3 + $0x10] sm:$0xff]
    %v672 = vld [vmem:[%s3 + $0x18] sm:$0xff]
    %v673 = vld [vmem:[%s3 + $0x20] sm:$0xff]
    %v674 = vld [vmem:[%s3 + $0x28] sm:$0xff]
    %v675 = vld [vmem:[%s3 + $0x30] sm:$0xff]
    %v676 = vld [vmem:[%s3 + $0x38] sm:$0xff]
    %678 = vset.pattern.permute.xlu0 0
    %679 = vperm.xlu0 %678, %v669
    %v680 = vpop.permute.xlu0 %679
    %683 = vset.pattern.permute.xlu0 0
    %684 = vperm.xlu0 %683, %v670
    %v685 = vpop.permute.xlu0 %684
    %688 = vset.pattern.permute.xlu0 0
    %689 = vperm.xlu0 %688, %v671
    %v690 = vpop.permute.xlu0 %689
    %693 = vset.pattern.permute.xlu0 0
    %694 = vperm.xlu0 %693, %v672
    %v695 = vpop.permute.xlu0 %694
    %698 = vset.pattern.permute.xlu0 0
    %699 = vperm.xlu0 %698, %v673
    %v700 = vpop.permute.xlu0 %699
    %703 = vset.pattern.permute.xlu0 0
    %704 = vperm.xlu0 %703, %v674
    %v705 = vpop.permute.xlu0 %704
    %708 = vset.pattern.permute.xlu0 0
    %709 = vperm.xlu0 %708, %v675
    %v710 = vpop.permute.xlu0 %709
    %713 = vset.pattern.permute.xlu0 0
    %714 = vperm.xlu0 %713, %v676
    %v715 = vpop.permute.xlu0 %714
    %v717 = vadd.f32 %v661, %v680
    %v718 = vadd.f32 %v662, %v685
    %v719 = vadd.f32 %v663, %v690
    %v720 = vadd.f32 %v664, %v695
    %v721 = vadd.f32 %v665, %v700
    %v722 = vadd.f32 %v666, %v705
    %v723 = vadd.f32 %v667, %v710
    %v724 = vadd.f32 %v668, %v715
    %vm725 = vcmp.ge.f32.partialorder %v717, 0.0
    %vm726 = vcmp.ge.f32.partialorder %v718, 0.0
    %vm727 = vcmp.ge.f32.partialorder %v719, 0.0
    %vm728 = vcmp.ge.f32.partialorder %v720, 0.0
    %vm729 = vcmp.ge.f32.partialorder %v721, 0.0
    %vm730 = vcmp.ge.f32.partialorder %v722, 0.0
    %vm731 = vcmp.ge.f32.partialorder %v723, 0.0
    %vm732 = vcmp.ge.f32.partialorder %v724, 0.0
    %v733 = vmul.f32 %v717, 0.2
    %v734 = vmul.f32 %v718, 0.2
    %v735 = vmul.f32 %v719, 0.2
    %v736 = vmul.f32 %v720, 0.2
    %v737 = vmul.f32 %v721, 0.2
    %v738 = vmul.f32 %v722, 0.2
    %v739 = vmul.f32 %v723, 0.2
    %v740 = vmul.f32 %v724, 0.2
    %v741 = vsel %vm725, %v717, %v733
    %v742 = vsel %vm726, %v718, %v734
    %v743 = vsel %vm727, %v719, %v735
    %v744 = vsel %vm728, %v720, %v736
    %v745 = vsel %vm729, %v721, %v737
    %v746 = vsel %vm730, %v722, %v738
    %v747 = vsel %vm731, %v723, %v739
    %v748 = vsel %vm732, %v724, %v740
    %v749 = vld [vmem:[%s4] sm:$0xff]
    %v750 = vld [vmem:[%s4 + $0x8] sm:$0xff]
    %v751 = vld [vmem:[%s4 + $0x10] sm:$0xff]
    %v752 = vld [vmem:[%s4 + $0x18] sm:$0xff]
    %v753 = vld [vmem:[%s4 + $0x20] sm:$0xff]
    %v754 = vld [vmem:[%s4 + $0x28] sm:$0xff]
    %v755 = vld [vmem:[%s4 + $0x30] sm:$0xff]
    %v756 = vld [vmem:[%s4 + $0x38] sm:$0xff]
    %v757 = vmul.f32 %v741, %v749
    %v758 = vmul.f32 %v742, %v750
    %v759 = vmul.f32 %v743, %v751
    %v760 = vmul.f32 %v744, %v752
    %v761 = vmul.f32 %v745, %v753
    %v762 = vmul.f32 %v746, %v754
    %v763 = vmul.f32 %v747, %v755
    %v764 = vmul.f32 %v748, %v756
    %v765 = vsel %vm507, %v757, 0.0
    %v766 = vsel %vm507, %v758, 0.0
    %v767 = vadd.f32 %v765, %v766
    %v768 = vsel %vm507, %v759, 0.0
    %v769 = vadd.f32 %v767, %v768
    %v770 = vsel %vm507, %v760, 0.0
    %v771 = vadd.f32 %v769, %v770
    %v772 = vsel %vm507, %v761, 0.0
    %v773 = vadd.f32 %v771, %v772
    %v774 = vsel %vm507, %v762, 0.0
    %v775 = vadd.f32 %v773, %v774
    %v776 = vsel %vm507, %v763, 0.0
    %v777 = vadd.f32 %v775, %v776
    %v778 = vsel %vm507, %v764, 0.0
    %v779 = vadd.f32 %v777, %v778
    %v780 = vrot.slane %v779, 4
    %v781 = vadd.f32 %v779, %v780
    %v782 = vrot.slane %v781, 2
    %v783 = vadd.f32 %v781, %v782
    %v784 = vrot.slane %v783, 1
    %v785 = vadd.f32 %v783, %v784
    %v786 = vld [vmem:[%s5] sm:$0xff]
    %v787 = vld [vmem:[%s5 + $0x8] sm:$0xff]
    %v788 = vld [vmem:[%s5 + $0x10] sm:$0xff]
    %v789 = vld [vmem:[%s5 + $0x18] sm:$0xff]
    %v791 = vsel %vm507, %v785, 0
    %793 = vmatprep.subr.mxu0 0.0
    %794 = vmatpush1.msra.mxu0 %v786
    %795 = vmatprep.subr.mxu0 0.0
    %796 = vmatpush1.msra.mxu0 %v787
    %797 = vmatprep.subr.mxu0 0.0
    %798 = vmatpush1.msra.mxu0 %v788
    %799 = vmatprep.subr.mxu0 0.0
    %800 = vmatpush1.msra.mxu0 %v789
    %801 = vmatprep.subr.mxu0 0.0
    %802 = vmatpush1.msra.mxu0 0.0
    %803 = vmatprep.subr.mxu0 0.0
    %804 = vmatpush1.msra.mxu0 0.0
    %805 = vmatprep.subr.mxu0 0.0
    %806 = vmatpush1.msra.mxu0 0.0
    %807 = vmatprep.subr.mxu0 0.0
    %808 = vmatpush1.msra.mxu0 0.0
    %809 = vmatprep.subr.mxu0 0.0
    %810 = vmatpush1.msra.mxu0 0.0
    %811 = vmatprep.subr.mxu0 0.0
    %812 = vmatpush1.msra.mxu0 0.0
    %813 = vmatprep.subr.mxu0 0.0
    %814 = vmatpush1.msra.mxu0 0.0
    %815 = vmatprep.subr.mxu0 0.0
    %816 = vmatpush1.msra.mxu0 0.0
    %817 = vmatprep.subr.mxu0 0.0
    %818 = vmatpush1.msra.mxu0 0.0
    %819 = vmatprep.subr.mxu0 0.0
    %820 = vmatpush1.msra.mxu0 0.0
    %821 = vmatprep.subr.mxu0 0.0
    %822 = vmatpush1.msra.mxu0 0.0
    %823 = vmatprep.subr.mxu0 0.0
    %824 = vmatpush1.msra.mxu0 0.0
    %825 = vmatprep.subr.mxu0 0.0
    %826 = vmatpush1.msra.mxu0 0.0
    %827 = vmatprep.subr.mxu0 0.0
    %828 = vmatpush1.msra.mxu0 0.0
    %829 = vmatprep.subr.mxu0 0.0
    %830 = vmatpush1.msra.mxu0 0.0
    %831 = vmatprep.subr.mxu0 0.0
    %832 = vmatpush1.msra.mxu0 0.0
    %833 = vmatprep.subr.mxu0 0.0
    %834 = vmatpush1.msra.mxu0 0.0
    %835 = vmatprep.subr.mxu0 0.0
    %836 = vmatpush1.msra.mxu0 0.0
    %837 = vmatprep.subr.mxu0 0.0
    %838 = vmatpush1.msra.mxu0 0.0
    %839 = vmatprep.subr.mxu0 0.0
    %840 = vmatpush1.msra.mxu0 0.0
    %841 = vmatprep.subr.mxu0 0.0
    %842 = vmatpush1.msra.mxu0 0.0
    %843 = vmatprep.subr.mxu0 0.0
    %844 = vmatpush1.msra.mxu0 0.0
    %845 = vmatprep.subr.mxu0 0.0
    %846 = vmatpush1.msra.mxu0 0.0
    %847 = vmatprep.subr.mxu0 0.0
    %848 = vmatpush1.msra.mxu0 0.0
    %849 = vmatprep.subr.mxu0 0.0
    %850 = vmatpush1.msra.mxu0 0.0
    %851 = vmatprep.subr.mxu0 0.0
    %852 = vmatpush1.msra.mxu0 0.0
    %853 = vmatprep.subr.mxu0 0.0
    %854 = vmatpush1.msra.mxu0 0.0
    %855 = vmatprep.subr.mxu0 0.0
    %856 = vmatpush1.msra.mxu0 0.0
    %857 = vmatprep.mubr.f32.mxu0 0.0
    %858 = vmatmul.mubr.f32.gmra.mrb[0].mxu0 %v791
    %v859 = vpop.f32.mrb[0].mxu0
    %v860 = vadd.f32 0.0, %v859
    %v861 = vpop.f32.mrb[0].mxu0
    %862 = vdwg.mxu0
    %v863 = vsub.f32 0.0, %v860
    %v864 = vmul.f32 %v863, 1.442695
    %v865 = vpow.pop %v864
    %v866 = vadd.f32 %v865, 1.0
    %v867 = vrcp.pop %v866
    %v868 = vmul.f32 1.0, %v867
    %vm869 = vcmask 8192
    %870 = vst.msk [vmem:[#allocation2] sm:$0x1] %vm869, %v868
    // Predicated region
    $region26: #{discriminator_forward.7} parent=1 // pred_check
      _
    $region27: #{discriminator_forward.7} parent=1 // pred_check_branch
      %872 = sbr.rel (0) target = $region29
    $region28: #{discriminator_forward.7} parent=1 // pred_region
      %s874 = ssub.s32 16, 16
      %875 = vsyncadd [#allocation3], %s874
      %s877 = sshll.u32 [#allocation2], 4
      %s878 = int_to_ptr.vmem [resolvable:$true] %s877
      %880 = dma.vmem_to_hbm [thread:$0]  %s878, 16, %s6, [#allocation3]
    $region29: #{discriminator_forward.7} parent=1 // pred_fallthru
      _
    // Predicated region
    $region30: #{discriminator_forward.7} parent=1 // pred_check
      _
    $region31: #{discriminator_forward.7} parent=1 // pred_check_branch
      %882 = sbr.rel (0) target = $region33
    $region32: #{discriminator_forward.7} parent=1 // pred_region
      %883 = dma.done [#allocation3], 16
    $region33: #{discriminator_forward.7} parent=1 // pred_fallthru
      _
    %884 = vsyncpa [#allocation3], 1

</llo_original>
